<compile_context>
chip_gen: v7x
topology: tpu7x:2x2x1
jax: 0.10.0
libtpu: 0.0.40
codegen_flags: <defaults>
</compile_context>

<pallas_src>
import functools

import jax
import jax.numpy as jnp
from jax import lax
from jax.experimental import pallas as pl
from jax.experimental.pallas import tpu as pltpu


# ------------------------------- fused kernel --------------------------------


def _fused_block_kernel(x_ref, we_ref, b1_ref, wdw_ref, b2_ref, wp_ref, b3_ref,
                        o_ref, hbuf,
                        *, H, W, th, off, stride, expand, use_res, hidden, cout):
    """One row band of the InvertedResidual block.

    x_ref : (H, W, cin)            whole input image (resident across bands)
    hbuf  : (th+2, Wpad, hidden)   VMEM scratch: expanded band, interior at
                                   sublane-aligned column `off`, zero pad
                                   columns at off-1 and off+W
    o_ref : (th//stride, W//stride, cout)
    """
    b = pl.program_id(1)
    nb = pl.num_programs(1)
    r0 = b * th
    tho = th // stride
    Wo = W // stride

    # ---- 1x1 expand (BN scale folded into we): ONE matmul over band + halo --
    x_top = x_ref[pl.ds(jnp.maximum(r0 - 1, 0), 1)]        # clamped; zeroed below
    x_mid = x_ref[pl.ds(r0, th)]                            # (th, W, cin)
    x_bot = x_ref[pl.ds(jnp.minimum(r0 + th, H - 1), 1)]    # clamped; zeroed below
    xwin = jnp.concatenate([x_top, x_mid, x_bot], axis=0)   # (th+2, W, cin)
    if expand:
        h = jnp.dot(xwin.reshape((th + 2) * W, xwin.shape[-1]), we_ref[...],
                    preferred_element_type=jnp.float32)
        h = jnp.clip(h + b1_ref[...], 0.0, 6.0).reshape(th + 2, W, hidden)
    else:                                                    # expand_ratio == 1
        h = xwin.astype(jnp.float32)

    # ---- stage the expanded band into hbuf (sublane-aligned interior) -------
    zcol = jnp.zeros((th + 2, 1, hidden), jnp.float32)
    hbuf[:, off - 1:off, :] = zcol                           # left zero-pad col
    hbuf[:, off + W:off + W + 1, :] = zcol                   # right zero-pad col
    hbuf[:, off:off + W, :] = h                              # aligned full store

    zrow = jnp.zeros((1, W, hidden), jnp.float32)

    @pl.when(b == 0)
    def _():                                                 # top image boundary
        hbuf[0:1, off:off + W, :] = zrow

    @pl.when(b == nb - 1)
    def _():                                                 # bottom image boundary
        hbuf[th + 1:th + 2, off:off + W, :] = zrow

    # ---- 3x3 depthwise (BN folded into wdw) + ReLU6; stride applied on read -
    wdw = wdw_ref[...]                                       # (3, 3, hidden)
    acc = jnp.zeros((tho, Wo, hidden), jnp.float32)
    for dj in range(3):
        c0 = off - 1 + dj
        if stride == 1:
            cols = hbuf[:, c0:c0 + W, :]                     # (th+2, W, hidden)
            taps = [cols[di:di + th] for di in range(3)]     # leading-dim slices
        else:
            # even/odd column gather straight from the ref (no concats, odd
            # output columns never computed); rows subsampled via leading-dim
            # reshape (layout-preserving).
            cols = hbuf[:, pl.ds(c0, Wo, stride=2), :]       # (th+2, Wo, hidden)
            ev = cols[0:th].reshape(tho, 2, Wo, hidden)
            sh = cols[2:th + 2].reshape(tho, 2, Wo, hidden)
            taps = [ev[:, 0], ev[:, 1], sh[:, 0]]
        for di in range(3):
            acc = acc + taps[di] * wdw[di:di + 1, dj:dj + 1, :]
    d = jnp.clip(acc + b2_ref[...], 0.0, 6.0)                # (tho, Wo, hidden)

    # ---- 1x1 project (BN folded into wp) + fused residual -------------------
    y = jnp.dot(d.reshape(tho * Wo, hidden), wp_ref[...],
                preferred_element_type=jnp.float32)
    y = y + b3_ref[...]
    if use_res:
        y = y + x_mid.reshape(th * W, x_mid.shape[-1])
    o_ref[...] = y.reshape(tho, Wo, cout).astype(o_ref.dtype)


# ------------------------------ pallas_call wrapper ---------------------------


def _round_up(v, m):
    return ((v + m - 1) // m) * m


def _vmem_capacity_bytes():
    try:
        cap = getattr(pltpu.get_tpu_info(), "vmem_capacity_bytes", None)
        if cap:
            return int(cap)
    except Exception:
        pass
    return 64 << 20          # conservative default (v7x-sized VMEM)


def _band_vmem_bytes(t, H, W, Wpad, hidden, cin, cout, stride):
    """Rough VMEM footprint of one band step (f32)."""
    f32 = 4
    tho, Wo = t // stride, W // stride
    hbuf = (t + 2) * Wpad * hidden * f32
    expand_tmp = (t + 2) * W * (cin + hidden) * f32          # xwin + expanded h
    taps = 3 * (t + 2) * Wo * hidden * f32                   # column-tap temporaries
    accs = 2 * tho * Wo * hidden * f32                       # acc + post-ReLU6
    io = 2 * H * W * cin * f32 + 2 * tho * Wo * cout * f32   # double-buffered blocks
    wts = 2 * (cin * hidden + 9 * hidden + hidden * cout + 2 * hidden + cout) * f32
    return hbuf + expand_tmp + taps + accs + io + wts


def _pick_band_rows(H, W, Wpad, hidden, cin, cout, stride, budget):
    """Largest band height that divides H, is a multiple of stride, keeps the
    output block sublane-aligned (unless it is the whole image), and fits the
    generation-aware VMEM budget."""
    valid = []
    for t in range(stride, H + 1, stride):
        if H % t:
            continue
        if H // t > 1 and (t // stride) % 8 != 0:
            continue
        valid.append(t)
    fitting = [t for t in valid
               if _band_vmem_bytes(t, H, W, Wpad, hidden, cin, cout, stride) <= budget]
    return max(fitting) if fitting else min(valid)


def fold_bn(gamma, beta, mean, var, eps=1e-5):
    scale = gamma / jnp.sqrt(var + eps)
    return scale, beta - mean * scale


def inverted_residual_forward(x_nchw, params, *, stride, expand_ratio, out_channels):
    assert stride in (1, 2)
    x = jnp.transpose(x_nchw, (0, 2, 3, 1)).astype(jnp.float32)    # NCHW -> NHWC
    N, H, W, cin = x.shape
    hidden = params["hidden"]
    expand = expand_ratio != 1
    use_res = (stride == 1) and (cin == out_channels)
    if stride == 2:
        assert H % 2 == 0 and W % 2 == 0, "stride-2 path assumes even H, W"

    # Fold BN scales into the conv weights (exact); kernel only adds biases.
    s2, b2 = fold_bn(*params["bn2"])
    s3, b3 = fold_bn(*params["bn3"])
    wdw = params["w_dw"] * s2[None, None, :]
    wp = params["w_proj"] * s3[None, :]
    if expand:
        s1, b1 = fold_bn(*params["bn1"])
        we = params["w_expand"] * s1[None, :]
    else:                                                           # unused in-kernel
        we = jnp.zeros((cin, hidden), jnp.float32)
        b1 = jnp.zeros((hidden,), jnp.float32)

    off = 8                                                         # aligned interior
    Wpad = off + _round_up(W + 1, 8)

    cap = _vmem_capacity_bytes()
    band_budget = int(cap * 2 // 5)                                 # ~26 MiB v7x, ~51 MiB v6e
    vmem_limit = max(32 << 20, min(int(cap * 3 // 4), 112 << 20))

    th = _pick_band_rows(H, W, Wpad, hidden, cin, out_channels, stride, band_budget)
    nb = H // th
    tho, Wo, Ho = th // stride, W // stride, H // stride

    kernel = functools.partial(
        _fused_block_kernel, H=H, W=W, th=th, off=off, stride=stride,
        expand=expand, use_res=use_res, hidden=hidden, cout=out_channels)

    def const(shape):
        return pl.BlockSpec(shape, lambda n, b: (0,) * len(shape))

    out = pl.pallas_call(
        kernel,
        out_shape=jax.ShapeDtypeStruct((N, Ho, Wo, out_channels), jnp.float32),
        grid=(N, nb),
        in_specs=[
            pl.BlockSpec((None, H, W, cin), lambda n, b: (n, 0, 0, 0)),
            const((cin, hidden)),
            const((1, hidden)),
            const((3, 3, hidden)),
            const((1, hidden)),
            const((hidden, out_channels)),
            const((1, out_channels)),
        ],
        out_specs=pl.BlockSpec((None, tho, Wo, out_channels),
                               lambda n, b: (n, b, 0, 0)),
        scratch_shapes=[pltpu.VMEM((th + 2, Wpad, hidden), jnp.float32)],
        compiler_params=pltpu.CompilerParams(
            dimension_semantics=("parallel", "parallel"),
            vmem_limit_bytes=int(vmem_limit)),
    )(x, we, b1.reshape(1, -1), wdw, b2.reshape(1, -1), wp, b3.reshape(1, -1))
    return jnp.transpose(out, (0, 3, 1, 2))                         # NHWC -> NCHW


# -------------------------------- parameters ----------------------------------


def make_params(key, in_ch, out_ch, expand_ratio):
    hidden = int(round(in_ch * expand_ratio))
    k = jax.random.split(key, 16)

    def bn(k0, k1, k2, k3, c):
        return (jax.random.uniform(k0, (c,), minval=0.5, maxval=1.5),
                0.1 * jax.random.normal(k1, (c,)),
                0.1 * jax.random.normal(k2, (c,)),
                jax.random.uniform(k3, (c,), minval=0.5, maxval=1.5))

    p = {"hidden": hidden}
    if expand_ratio != 1:
        # PyTorch 1x1 conv weight is (hidden, in, 1, 1); stored here as (in, hidden).
        p["w_expand"] = 0.3 * jax.random.normal(k[0], (in_ch, hidden), dtype=jnp.float32)
        p["bn1"] = bn(k[1], k[2], k[3], k[4], hidden)
    # PyTorch depthwise weight is (hidden, 1, 3, 3); stored here as (3, 3, hidden).
    p["w_dw"] = 0.3 * jax.random.normal(k[5], (3, 3, hidden), dtype=jnp.float32)
    p["bn2"] = bn(k[6], k[7], k[8], k[9], hidden)
    # PyTorch project weight is (out, hidden, 1, 1); stored here as (hidden, out).
    p["w_proj"] = 0.3 * jax.random.normal(k[10], (hidden, out_ch), dtype=jnp.float32)
    p["bn3"] = bn(k[11], k[12], k[13], k[14], out_ch)
    return p


# ------------------------------ pure-JAX reference -----------------------------


def reference_forward(x_nchw, params, *, stride, expand_ratio, out_channels):
    x = jnp.transpose(x_nchw, (0, 2, 3, 1)).astype(jnp.float32)
    hidden = params["hidden"]
    cin = x.shape[-1]
    use_res = (stride == 1) and (cin == out_channels)
    prec = lax.Precision.HIGHEST

    def conv1x1(h, w):
        return lax.conv_general_dilated(
            h, w.reshape(1, 1, *w.shape), (1, 1), "VALID",
            dimension_numbers=("NHWC", "HWIO", "NHWC"), precision=prec)

    h = x
    if expand_ratio != 1:
        s1, b1 = fold_bn(*params["bn1"])
        h = jnp.clip(conv1x1(h, params["w_expand"]) * s1 + b1, 0.0, 6.0)
    s2, b2 = fold_bn(*params["bn2"])
    wdw = params["w_dw"].reshape(3, 3, 1, hidden)
    d = lax.conv_general_dilated(
        h, wdw, (stride, stride), ((1, 1), (1, 1)),
        dimension_numbers=("NHWC", "HWIO", "NHWC"),
        feature_group_count=hidden, precision=prec)
    d = jnp.clip(d * s2 + b2, 0.0, 6.0)
    s3, b3 = fold_bn(*params["bn3"])
    o = conv1x1(d, params["w_proj"]) * s3 + b3
    if use_res:
        o = o + x
    return jnp.transpose(o, (0, 3, 1, 2))


# ------------------------------------ main --------------------------------------


if __name__ == "__main__":
    key = jax.random.PRNGKey(0)
    kx, kp1, kp2, kp3 = jax.random.split(key, 4)

    configs = [
        # (in_ch, out_ch, stride, expand_ratio)
        (4, 4, 1, 6),    # expand + residual path
        (4, 8, 2, 6),    # expand + stride-2 downsample (no residual)
        (4, 4, 1, 1),    # expand_ratio == 1 path (depthwise + project only)
    ]
    for (in_ch, out_ch, stride, er), kp in zip(configs, (kp1, kp2, kp3)):
        x = jax.random.normal(kx, (2, in_ch, 16, 16), dtype=jnp.float32)  # NCHW
        params = make_params(kp, in_ch, out_ch, er)

        out = inverted_residual_forward(
            x, params, stride=stride, expand_ratio=er, out_channels=out_ch)
        out = jax.block_until_ready(out)

        ref = reference_forward(
            x, params, stride=stride, expand_ratio=er, out_channels=out_ch)
        assert out.shape == ref.shape, (out.shape, ref.shape)
        err = float(jnp.abs(out - ref).max())
        assert err < 2e-3, err

    print("KERNEL_OK")
</pallas_src>

<mosaic_0001>
module attributes {stable_mosaic.version = 11 : i64} {
  func.func @_fused_block_kernel(%arg0: i32, %arg1: i32, %arg2: memref<1x16x16x4xf32, #tpu.memory_space<vmem>>, %arg3: memref<4x24xf32, #tpu.memory_space<vmem>>, %arg4: memref<1x24xf32, #tpu.memory_space<vmem>>, %arg5: memref<3x3x24xf32, #tpu.memory_space<vmem>>, %arg6: memref<1x24xf32, #tpu.memory_space<vmem>>, %arg7: memref<24x4xf32, #tpu.memory_space<vmem>>, %arg8: memref<1x4xf32, #tpu.memory_space<vmem>>, %arg9: memref<1x16x16x4xf32, #tpu.memory_space<vmem>>, %arg10: memref<18x32x24xf32, #tpu.memory_space<vmem>>) attributes {dimension_semantics = [#tpu.dimension_semantics<parallel>, #tpu.dimension_semantics<parallel>], iteration_bounds = array<i64: 2, 1>, scalar_prefetch = 0 : i64, scratch_operands = 1 : i64, tpu.core_type = #tpu.core_type<tc>, window_params = [{transform_indices = @transform_0, window_bounds = array<i64: 1, 16, 16, 4>}, {pipeline_mode = #tpu.pipeline_mode<synchronous>, transform_indices = @transform_1, window_bounds = array<i64: 4, 24>}, {pipeline_mode = #tpu.pipeline_mode<synchronous>, transform_indices = @transform_2, window_bounds = array<i64: 1, 24>}, {pipeline_mode = #tpu.pipeline_mode<synchronous>, transform_indices = @transform_3, window_bounds = array<i64: 3, 3, 24>}, {pipeline_mode = #tpu.pipeline_mode<synchronous>, transform_indices = @transform_4, window_bounds = array<i64: 1, 24>}, {pipeline_mode = #tpu.pipeline_mode<synchronous>, transform_indices = @transform_5, window_bounds = array<i64: 24, 4>}, {pipeline_mode = #tpu.pipeline_mode<synchronous>, transform_indices = @transform_6, window_bounds = array<i64: 1, 4>}, {transform_indices = @transform_7, window_bounds = array<i64: 1, 16, 16, 4>}]} {
    %c16_i32 = arith.constant 16 : i32
    %0 = arith.muli %arg1, %c16_i32 : i32
    %c1_i32 = arith.constant 1 : i32
    %1 = arith.subi %0, %c1_i32 : i32
    %c0_i32 = arith.constant 0 : i32
    %2 = arith.maxsi %1, %c0_i32 : i32
    %c0 = arith.constant 0 : index
    %3 = arith.index_cast %2 : i32 to index
    %c0_0 = arith.constant 0 : index
    %c0_1 = arith.constant 0 : index
    %4 = vector.load %arg2[%c0, %3, %c0_0, %c0_1] : memref<1x16x16x4xf32, #tpu.memory_space<vmem>>, vector<1x1x16x4xf32>
    %5 = vector.shape_cast %4 : vector<1x1x16x4xf32> to vector<1x16x4xf32>
    %c0_2 = arith.constant 0 : index
    %6 = arith.index_cast %0 : i32 to index
    %c0_3 = arith.constant 0 : index
    %c0_4 = arith.constant 0 : index
    %7 = vector.load %arg2[%c0_2, %6, %c0_3, %c0_4] : memref<1x16x16x4xf32, #tpu.memory_space<vmem>>, vector<1x16x16x4xf32>
    %8 = vector.shape_cast %7 : vector<1x16x16x4xf32> to vector<16x16x4xf32>
    %c16_i32_5 = arith.constant 16 : i32
    %9 = arith.addi %0, %c16_i32_5 : i32
    %c15_i32 = arith.constant 15 : i32
    %10 = arith.minsi %9, %c15_i32 : i32
    %c0_6 = arith.constant 0 : index
    %11 = arith.index_cast %10 : i32 to index
    %c0_7 = arith.constant 0 : index
    %c0_8 = arith.constant 0 : index
    %12 = vector.load %arg2[%c0_6, %11, %c0_7, %c0_8] : memref<1x16x16x4xf32, #tpu.memory_space<vmem>>, vector<1x1x16x4xf32>
    %13 = vector.shape_cast %12 : vector<1x1x16x4xf32> to vector<1x16x4xf32>
    %14 = tpu.concatenate %5, %8, %13 in 0 : vector<1x16x4xf32>, vector<16x16x4xf32>, vector<1x16x4xf32> -> vector<18x16x4xf32>
    %15 = vector.shape_cast %14 : vector<18x16x4xf32> to vector<288x4xf32>
    %c0_9 = arith.constant 0 : index
    %c0_10 = arith.constant 0 : index
    %16 = vector.load %arg3[%c0_9, %c0_10] : memref<4x24xf32, #tpu.memory_space<vmem>>, vector<4x24xf32>
    %cst = arith.constant dense<0.000000e+00> : vector<288x24xf32>
    %17 = tpu.matmul %15, %16, %cst {dimension_numbers = #tpu.dot_dimension_numbers<[1], [0], [0], [1], [0, 0, 1, 1], [], []>} : vector<288x4xf32>, vector<4x24xf32>, vector<288x24xf32> -> vector<288x24xf32>
    %c0_11 = arith.constant 0 : index
    %c0_12 = arith.constant 0 : index
    %18 = vector.load %arg4[%c0_11, %c0_12] : memref<1x24xf32, #tpu.memory_space<vmem>>, vector<1x24xf32>
    %19 = vector.broadcast %18 : vector<1x24xf32> to vector<288x24xf32>
    %20 = arith.addf %17, %19 : vector<288x24xf32>
    %cst_13 = arith.constant 0.000000e+00 : f32
    %cst_14 = arith.constant 6.000000e+00 : f32
    %21 = vector.broadcast %cst_13 : f32 to vector<288x24xf32>
    %22 = arith.maximumf %21, %20 : vector<288x24xf32>
    %23 = vector.broadcast %cst_14 : f32 to vector<288x24xf32>
    %24 = arith.minimumf %23, %22 : vector<288x24xf32>
    %25 = vector.shape_cast %24 : vector<288x24xf32> to vector<18x16x24xf32>
    %cst_15 = arith.constant 0.000000e+00 : f32
    %26 = vector.broadcast %cst_15 : f32 to vector<18x1x24xf32>
    %c0_16 = arith.constant 0 : index
    %c7 = arith.constant 7 : index
    %c0_17 = arith.constant 0 : index
    %27 = vector.load %arg10[%c0_16, %c7, %c0_17] : memref<18x32x24xf32, #tpu.memory_space<vmem>>, vector<18x1x24xf32>
    tpu.vector_store %arg10[%c0_16, %c7, %c0_17], %26 {strides = array<i32>} : memref<18x32x24xf32, #tpu.memory_space<vmem>>, vector<18x1x24xf32>,
    %c0_18 = arith.constant 0 : index
    %c24 = arith.constant 24 : index
    %c0_19 = arith.constant 0 : index
    %28 = vector.load %arg10[%c0_18, %c24, %c0_19] : memref<18x32x24xf32, #tpu.memory_space<vmem>>, vector<18x1x24xf32>
    tpu.vector_store %arg10[%c0_18, %c24, %c0_19], %26 {strides = array<i32>} : memref<18x32x24xf32, #tpu.memory_space<vmem>>, vector<18x1x24xf32>,
    %c0_20 = arith.constant 0 : index
    %c8 = arith.constant 8 : index
    %c0_21 = arith.constant 0 : index
    %29 = vector.load %arg10[%c0_20, %c8, %c0_21] : memref<18x32x24xf32, #tpu.memory_space<vmem>>, vector<18x16x24xf32>
    tpu.vector_store %arg10[%c0_20, %c8, %c0_21], %25 {strides = array<i32>} : memref<18x32x24xf32, #tpu.memory_space<vmem>>, vector<18x16x24xf32>,
    %cst_22 = arith.constant 0.000000e+00 : f32
    %30 = vector.broadcast %cst_22 : f32 to vector<1x16x24xf32>
    %c0_i32_23 = arith.constant 0 : i32
    %31 = arith.cmpi eq, %arg1, %c0_i32_23 : i32
    %32 = arith.extui %31 : i1 to i32
    %c0_i32_24 = arith.constant 0 : i32
    %33 = arith.cmpi ne, %32, %c0_i32_24 : i32
    scf.if %33 {
      %c0_52 = arith.constant 0 : index
      %c8_53 = arith.constant 8 : index
      %c0_54 = arith.constant 0 : index
      %107 = vector.load %arg10[%c0_52, %c8_53, %c0_54] : memref<18x32x24xf32, #tpu.memory_space<vmem>>, vector<1x16x24xf32>
      tpu.vector_store %arg10[%c0_52, %c8_53, %c0_54], %30 {strides = array<i32>} : memref<18x32x24xf32, #tpu.memory_space<vmem>>, vector<1x16x24xf32>,
    } else {
    }
    %c0_i32_25 = arith.constant 0 : i32
    %34 = arith.cmpi eq, %arg1, %c0_i32_25 : i32
    %35 = arith.extui %34 : i1 to i32
    %c0_i32_26 = arith.constant 0 : i32
    %36 = arith.cmpi ne, %35, %c0_i32_26 : i32
    scf.if %36 {
      %c17 = arith.constant 17 : index
      %c8_52 = arith.constant 8 : index
      %c0_53 = arith.constant 0 : index
      %107 = vector.load %arg10[%c17, %c8_52, %c0_53] : memref<18x32x24xf32, #tpu.memory_space<vmem>>, vector<1x16x24xf32>
      tpu.vector_store %arg10[%c17, %c8_52, %c0_53], %30 {strides = array<i32>} : memref<18x32x24xf32, #tpu.memory_space<vmem>>, vector<1x16x24xf32>,
    } else {
    }
    %c0_27 = arith.constant 0 : index
    %c0_28 = arith.constant 0 : index
    %c0_29 = arith.constant 0 : index
    %37 = vector.load %arg5[%c0_27, %c0_28, %c0_29] : memref<3x3x24xf32, #tpu.memory_space<vmem>>, vector<3x3x24xf32>
    %cst_30 = arith.constant 0.000000e+00 : f32
    %38 = vector.broadcast %cst_30 : f32 to vector<16x16x24xf32>
    %c0_31 = arith.constant 0 : index
    %c7_32 = arith.constant 7 : index
    %c0_33 = arith.constant 0 : index
    %39 = vector.load %arg10[%c0_31, %c7_32, %c0_33] : memref<18x32x24xf32, #tpu.memory_space<vmem>>, vector<18x16x24xf32>
    %40 = vector.extract_strided_slice %39 {offsets = [0, 0, 0], sizes = [16, 16, 24], strides = [1, 1, 1]} : vector<18x16x24xf32> to vector<16x16x24xf32>
    %41 = vector.extract_strided_slice %39 {offsets = [1, 0, 0], sizes = [16, 16, 24], strides = [1, 1, 1]} : vector<18x16x24xf32> to vector<16x16x24xf32>
    %42 = vector.extract_strided_slice %39 {offsets = [2, 0, 0], sizes = [16, 16, 24], strides = [1, 1, 1]} : vector<18x16x24xf32> to vector<16x16x24xf32>
    %43 = vector.extract_strided_slice %37 {offsets = [0, 0, 0], sizes = [1, 1, 24], strides = [1, 1, 1]} : vector<3x3x24xf32> to vector<1x1x24xf32>
    %44 = vector.broadcast %43 : vector<1x1x24xf32> to vector<16x16x24xf32>
    %45 = arith.mulf %40, %44 : vector<16x16x24xf32>
    %46 = arith.addf %38, %45 : vector<16x16x24xf32>
    %47 = vector.extract_strided_slice %37 {offsets = [1, 0, 0], sizes = [1, 1, 24], strides = [1, 1, 1]} : vector<3x3x24xf32> to vector<1x1x24xf32>
    %48 = vector.broadcast %47 : vector<1x1x24xf32> to vector<16x16x24xf32>
    %49 = arith.mulf %41, %48 : vector<16x16x24xf32>
    %50 = arith.addf %46, %49 : vector<16x16x24xf32>
    %51 = vector.extract_strided_slice %37 {offsets = [2, 0, 0], sizes = [1, 1, 24], strides = [1, 1, 1]} : vector<3x3x24xf32> to vector<1x1x24xf32>
    %52 = vector.broadcast %51 : vector<1x1x24xf32> to vector<16x16x24xf32>
    %53 = arith.mulf %42, %52 : vector<16x16x24xf32>
    %54 = arith.addf %50, %53 : vector<16x16x24xf32>
    %c0_34 = arith.constant 0 : index
    %c8_35 = arith.constant 8 : index
    %c0_36 = arith.constant 0 : index
    %55 = vector.load %arg10[%c0_34, %c8_35, %c0_36] : memref<18x32x24xf32, #tpu.memory_space<vmem>>, vector<18x16x24xf32>
    %56 = vector.extract_strided_slice %55 {offsets = [0, 0, 0], sizes = [16, 16, 24], strides = [1, 1, 1]} : vector<18x16x24xf32> to vector<16x16x24xf32>
    %57 = vector.extract_strided_slice %55 {offsets = [1, 0, 0], sizes = [16, 16, 24], strides = [1, 1, 1]} : vector<18x16x24xf32> to vector<16x16x24xf32>
    %58 = vector.extract_strided_slice %55 {offsets = [2, 0, 0], sizes = [16, 16, 24], strides = [1, 1, 1]} : vector<18x16x24xf32> to vector<16x16x24xf32>
    %59 = vector.extract_strided_slice %37 {offsets = [0, 1, 0], sizes = [1, 1, 24], strides = [1, 1, 1]} : vector<3x3x24xf32> to vector<1x1x24xf32>
    %60 = vector.broadcast %59 : vector<1x1x24xf32> to vector<16x16x24xf32>
    %61 = arith.mulf %56, %60 : vector<16x16x24xf32>
    %62 = arith.addf %54, %61 : vector<16x16x24xf32>
    %63 = vector.extract_strided_slice %37 {offsets = [1, 1, 0], sizes = [1, 1, 24], strides = [1, 1, 1]} : vector<3x3x24xf32> to vector<1x1x24xf32>
    %64 = vector.broadcast %63 : vector<1x1x24xf32> to vector<16x16x24xf32>
    %65 = arith.mulf %57, %64 : vector<16x16x24xf32>
    %66 = arith.addf %62, %65 : vector<16x16x24xf32>
    %67 = vector.extract_strided_slice %37 {offsets = [2, 1, 0], sizes = [1, 1, 24], strides = [1, 1, 1]} : vector<3x3x24xf32> to vector<1x1x24xf32>
    %68 = vector.broadcast %67 : vector<1x1x24xf32> to vector<16x16x24xf32>
    %69 = arith.mulf %58, %68 : vector<16x16x24xf32>
    %70 = arith.addf %66, %69 : vector<16x16x24xf32>
    %c0_37 = arith.constant 0 : index
    %c9 = arith.constant 9 : index
    %c0_38 = arith.constant 0 : index
    %71 = vector.load %arg10[%c0_37, %c9, %c0_38] : memref<18x32x24xf32, #tpu.memory_space<vmem>>, vector<18x16x24xf32>
    %72 = vector.extract_strided_slice %71 {offsets = [0, 0, 0], sizes = [16, 16, 24], strides = [1, 1, 1]} : vector<18x16x24xf32> to vector<16x16x24xf32>
    %73 = vector.extract_strided_slice %71 {offsets = [1, 0, 0], sizes = [16, 16, 24], strides = [1, 1, 1]} : vector<18x16x24xf32> to vector<16x16x24xf32>
    %74 = vector.extract_strided_slice %71 {offsets = [2, 0, 0], sizes = [16, 16, 24], strides = [1, 1, 1]} : vector<18x16x24xf32> to vector<16x16x24xf32>
    %75 = vector.extract_strided_slice %37 {offsets = [0, 2, 0], sizes = [1, 1, 24], strides = [1, 1, 1]} : vector<3x3x24xf32> to vector<1x1x24xf32>
    %76 = vector.broadcast %75 : vector<1x1x24xf32> to vector<16x16x24xf32>
    %77 = arith.mulf %72, %76 : vector<16x16x24xf32>
    %78 = arith.addf %70, %77 : vector<16x16x24xf32>
    %79 = vector.extract_strided_slice %37 {offsets = [1, 2, 0], sizes = [1, 1, 24], strides = [1, 1, 1]} : vector<3x3x24xf32> to vector<1x1x24xf32>
    %80 = vector.broadcast %79 : vector<1x1x24xf32> to vector<16x16x24xf32>
    %81 = arith.mulf %73, %80 : vector<16x16x24xf32>
    %82 = arith.addf %78, %81 : vector<16x16x24xf32>
    %83 = vector.extract_strided_slice %37 {offsets = [2, 2, 0], sizes = [1, 1, 24], strides = [1, 1, 1]} : vector<3x3x24xf32> to vector<1x1x24xf32>
    %84 = vector.broadcast %83 : vector<1x1x24xf32> to vector<16x16x24xf32>
    %85 = arith.mulf %74, %84 : vector<16x16x24xf32>
    %86 = arith.addf %82, %85 : vector<16x16x24xf32>
    %c0_39 = arith.constant 0 : index
    %c0_40 = arith.constant 0 : index
    %87 = vector.load %arg6[%c0_39, %c0_40] : memref<1x24xf32, #tpu.memory_space<vmem>>, vector<1x24xf32>
    %88 = vector.shape_cast %87 : vector<1x24xf32> to vector<1x1x24xf32>
    %89 = vector.broadcast %88 : vector<1x1x24xf32> to vector<16x16x24xf32>
    %90 = arith.addf %86, %89 : vector<16x16x24xf32>
    %cst_41 = arith.constant 0.000000e+00 : f32
    %cst_42 = arith.constant 6.000000e+00 : f32
    %91 = vector.broadcast %cst_41 : f32 to vector<16x16x24xf32>
    %92 = arith.maximumf %91, %90 : vector<16x16x24xf32>
    %93 = vector.broadcast %cst_42 : f32 to vector<16x16x24xf32>
    %94 = arith.minimumf %93, %92 : vector<16x16x24xf32>
    %95 = vector.shape_cast %94 : vector<16x16x24xf32> to vector<256x24xf32>
    %c0_43 = arith.constant 0 : index
    %c0_44 = arith.constant 0 : index
    %96 = vector.load %arg7[%c0_43, %c0_44] : memref<24x4xf32, #tpu.memory_space<vmem>>, vector<24x4xf32>
    %cst_45 = arith.constant dense<0.000000e+00> : vector<256x4xf32>
    %97 = tpu.matmul %95, %96, %cst_45 {dimension_numbers = #tpu.dot_dimension_numbers<[1], [0], [0], [1], [0, 0, 1, 1], [], []>} : vector<256x24xf32>, vector<24x4xf32>, vector<256x4xf32> -> vector<256x4xf32>
    %c0_46 = arith.constant 0 : index
    %c0_47 = arith.constant 0 : index
    %98 = vector.load %arg8[%c0_46, %c0_47] : memref<1x4xf32, #tpu.memory_space<vmem>>, vector<1x4xf32>
    %99 = vector.broadcast %98 : vector<1x4xf32> to vector<256x4xf32>
    %100 = arith.addf %97, %99 : vector<256x4xf32>
    %101 = vector.shape_cast %8 : vector<16x16x4xf32> to vector<256x4xf32>
    %102 = arith.addf %100, %101 : vector<256x4xf32>
    %103 = vector.shape_cast %102 : vector<256x4xf32> to vector<16x16x4xf32>
    %c0_48 = arith.constant 0 : index
    %c0_49 = arith.constant 0 : index
    %c0_50 = arith.constant 0 : index
    %c0_51 = arith.constant 0 : index
    %104 = vector.load %arg9[%c0_48, %c0_49, %c0_50, %c0_51] : memref<1x16x16x4xf32, #tpu.memory_space<vmem>>, vector<1x16x16x4xf32>
    %105 = vector.shape_cast %104 : vector<1x16x16x4xf32> to vector<16x16x4xf32>
    %106 = vector.shape_cast %103 : vector<16x16x4xf32> to vector<1x16x16x4xf32>
    tpu.vector_store %arg9[%c0_48, %c0_49, %c0_50, %c0_51], %106 {strides = array<i32>} : memref<1x16x16x4xf32, #tpu.memory_space<vmem>>, vector<1x16x16x4xf32>,
    return
  }
  func.func @transform_0(%arg0: i32, %arg1: i32) -> (i32, i32, i32, i32) {
    %c0_i32 = arith.constant 0 : i32
    %c0_i32_0 = arith.constant 0 : i32
    %c0_i32_1 = arith.constant 0 : i32
    %c0_i32_2 = arith.constant 0 : i32
    return %arg0, %c0_i32, %c0_i32_0, %c0_i32_1 : i32, i32, i32, i32
  }
  func.func @transform_1(%arg0: i32, %arg1: i32) -> (i32, i32) {
    %c0_i32 = arith.constant 0 : i32
    %c0_i32_0 = arith.constant 0 : i32
    %c0_i32_1 = arith.constant 0 : i32
    return %c0_i32, %c0_i32_0 : i32, i32
  }
  func.func @transform_2(%arg0: i32, %arg1: i32) -> (i32, i32) {
    %c0_i32 = arith.constant 0 : i32
    %c0_i32_0 = arith.constant 0 : i32
    %c0_i32_1 = arith.constant 0 : i32
    return %c0_i32, %c0_i32_0 : i32, i32
  }
  func.func @transform_3(%arg0: i32, %arg1: i32) -> (i32, i32, i32) {
    %c0_i32 = arith.constant 0 : i32
    %c0_i32_0 = arith.constant 0 : i32
    %c0_i32_1 = arith.constant 0 : i32
    %c0_i32_2 = arith.constant 0 : i32
    return %c0_i32, %c0_i32_0, %c0_i32_1 : i32, i32, i32
  }
  func.func @transform_4(%arg0: i32, %arg1: i32) -> (i32, i32) {
    %c0_i32 = arith.constant 0 : i32
    %c0_i32_0 = arith.constant 0 : i32
    %c0_i32_1 = arith.constant 0 : i32
    return %c0_i32, %c0_i32_0 : i32, i32
  }
  func.func @transform_5(%arg0: i32, %arg1: i32) -> (i32, i32) {
    %c0_i32 = arith.constant 0 : i32
    %c0_i32_0 = arith.constant 0 : i32
    %c0_i32_1 = arith.constant 0 : i32
    return %c0_i32, %c0_i32_0 : i32, i32
  }
  func.func @transform_6(%arg0: i32, %arg1: i32) -> (i32, i32) {
    %c0_i32 = arith.constant 0 : i32
    %c0_i32_0 = arith.constant 0 : i32
    %c0_i32_1 = arith.constant 0 : i32
    return %c0_i32, %c0_i32_0 : i32, i32
  }
  func.func @transform_7(%arg0: i32, %arg1: i32) -> (i32, i32, i32, i32) {
    %c0_i32 = arith.constant 0 : i32
    %c0_i32_0 = arith.constant 0 : i32
    %c0_i32_1 = arith.constant 0 : i32
    return %arg0, %arg1, %c0_i32, %c0_i32_0 : i32, i32, i32, i32
  }
}

</mosaic_0001>

<llo_original>
// kernel: tpu_custom_call.1
$region0: #{tpu_custom_call.1}
  #allocation0 [shape = 'u32[]', space=smem, size = 0x4, offset = 0x4, fixed_abs, tag = 'smem constant byte address 0x4 - core index']
  #allocation1 [shape = 'u32[144,128]{1,0:T(1,128)}', space=vmem, size = 0x12000, scoped, tag = 'internal scratch']
  #allocation2 [shape = 'f32[18,32,24]{2,1,0:T(8,128)}', space=vmem, size = 0x48000, scoped, tag = 'scratch operand']
  %s0 = inlined_call_operand.vmem [shape: f32[2,16,16,4], index: 0, kind: input, shape index: {}]
  %s1 = inlined_call_operand.vmem [shape: f32[4,24], index: 1, kind: input, shape index: {}]
  %s2 = inlined_call_operand.vmem [shape: f32[1,24], index: 2, kind: input, shape index: {}]
  %s3 = inlined_call_operand.vmem [shape: f32[3,3,24], index: 3, kind: input, shape index: {}]
  %s4 = inlined_call_operand.vmem [shape: f32[1,24], index: 4, kind: input, shape index: {}]
  %s5 = inlined_call_operand.vmem [shape: f32[24,4], index: 5, kind: input, shape index: {}]
  %s6 = inlined_call_operand.vmem [shape: f32[1,4], index: 6, kind: input, shape index: {}]
  %s7 = inlined_call_operand.vmem [shape: f32[2,16,16,4], index: 7, kind: output, shape index: {}]
  %s8 = sld [smem:[#allocation0]]
  $region65: #{tpu_custom_call.1} parent=0
    _
  %s10 = ssub.s32 1, %s8
  %s11 = scalar_select 0, %s10, %s8
  loop: start=0, step=1, limit=4
  $region2: #{tpu_custom_call.1} parent=0 // loop_pre_header
    _
  $region3: #{tpu_custom_call.1} parent=0 // loop_header
    %s13 = sphi 0, %s17
    %p14 = scmp.ge.s32.totalorder %s13, 4
    %s20 = sphi 0, %s32
    %s21 = sphi 0, %s28
    %s22 = sphi 0, %s20
    %s23 = sphi 0, %s21
    %s24 = sphi 0, %s22
    %s25 = sphi 0, %s23
    %s35 = sphi 0, %s37
    %s38 = sphi 0, %s35
    %s39 = sphi 0, %s38
    %s55 = sphi 0, %s39
    %s59 = sphi 0, %s59
    %s61 = sphi 0, %s59
    %s62 = sphi 0, %s61
    %s76 = sphi 0, %s62
    %s80 = sphi 0, %s80
    %s82 = sphi 0, %s80
    %s83 = sphi 0, %s82
    %s97 = sphi 0, %s83
    %s101 = sphi 0, %s101
    %s103 = sphi 0, %s101
    %s104 = sphi 0, %s103
    %s118 = sphi 0, %s104
    %s122 = sphi 0, %s122
    %s124 = sphi 0, %s122
    %s125 = sphi 0, %s124
    %s139 = sphi 0, %s125
    %s143 = sphi 0, %s143
    %s145 = sphi 0, %s143
    %s146 = sphi 0, %s145
    %s160 = sphi 0, %s146
    %s164 = sphi 0, %s164
    %s166 = sphi 0, %s164
    %s167 = sphi 0, %s166
    %s181 = sphi 0, %s167
    %s189 = sphi 0, %s191
    %s192 = sphi 0, %s189
    %s193 = sphi 0, %s192
    %s209 = sphi 0, %s193
  $region4: #{tpu_custom_call.1} parent=0 // loop_header_branch
    %16 = sbr.rel (%p14) target = $region8
  $region5: #{tpu_custom_call.1} parent=0 // loop_body
    %s18 = ssub.s32 %s13, 1
    %s19 = ssub.s32 %s13, 2
    %s26 = sadd.s32 1, %s21
    %p27 = scmp.ge.s32.totalorder %s26, 1
    %s28 = scalar_select %p27, 0, %s26
    %s29 = sadd.s32 1, %s20
    %s30 = scalar_select %p27, %s29, %s20
    %p31 = scmp.ge.s32.totalorder %s30, 2
    %s32 = scalar_select %p31, 0, %s30
    %s33 = ssub.s32 %s20, %s32
    %p34 = scmp.eq.s32.totalorder %s33, 0
    %s36 = sadd.s32 %s35, 1
    %s37 = scalar_select %p34, %s35, %s36
    %p40 = pneg %p34
    %p41 = scmp.eq.s32.totalorder %s13, 1
    %p42 = por %p40, %p41
    %p43 = scmp.ne.s32.totalorder %s35, %s38
    %p44 = scmp.eq.s32.totalorder %s13, 0
    %p45 = por %p43, %p44
    %p46 = scmp.ne.s32.totalorder %s35, %s38
    %p47 = scmp.eq.s32.totalorder %s18, 1
    %p48 = por %p46, %p47
    %p49 = scmp.ne.s32.totalorder %s38, %s39
    %p50 = scmp.eq.s32.totalorder %s18, 0
    %p51 = por %p49, %p50
    %p52 = scmp.ne.s32.totalorder %s38, %s39
    %p53 = scmp.eq.s32.totalorder %s19, 1
    %p54 = por %p52, %p53
    %p56 = scmp.ne.s32.totalorder %s39, %s55
    %p57 = scmp.eq.s32.totalorder %s19, 0
    %p58 = por %p56, %p57
    %s60 = sadd.s32 %s59, 1
    %p63 = scmp.eq.s32.totalorder %s13, 1
    %p64 = scmp.ne.s32.totalorder %s59, %s61
    %p65 = scmp.eq.s32.totalorder %s13, 0
    %p66 = por %p64, %p65
    %p67 = scmp.ne.s32.totalorder %s59, %s61
    %p68 = scmp.eq.s32.totalorder %s18, 1
    %p69 = por %p67, %p68
    %p70 = scmp.ne.s32.totalorder %s61, %s62
    %p71 = scmp.eq.s32.totalorder %s18, 0
    %p72 = por %p70, %p71
    %p73 = scmp.ne.s32.totalorder %s61, %s62
    %p74 = scmp.eq.s32.totalorder %s19, 1
    %p75 = por %p73, %p74
    %p77 = scmp.ne.s32.totalorder %s62, %s76
    %p78 = scmp.eq.s32.totalorder %s19, 0
    %p79 = por %p77, %p78
    %s81 = sadd.s32 %s80, 1
    %p84 = scmp.eq.s32.totalorder %s13, 1
    %p85 = scmp.ne.s32.totalorder %s80, %s82
    %p86 = scmp.eq.s32.totalorder %s13, 0
    %p87 = por %p85, %p86
    %p88 = scmp.ne.s32.totalorder %s80, %s82
    %p89 = scmp.eq.s32.totalorder %s18, 1
    %p90 = por %p88, %p89
    %p91 = scmp.ne.s32.totalorder %s82, %s83
    %p92 = scmp.eq.s32.totalorder %s18, 0
    %p93 = por %p91, %p92
    %p94 = scmp.ne.s32.totalorder %s82, %s83
    %p95 = scmp.eq.s32.totalorder %s19, 1
    %p96 = por %p94, %p95
    %p98 = scmp.ne.s32.totalorder %s83, %s97
    %p99 = scmp.eq.s32.totalorder %s19, 0
    %p100 = por %p98, %p99
    %s102 = sadd.s32 %s101, 1
    %p105 = scmp.eq.s32.totalorder %s13, 1
    %p106 = scmp.ne.s32.totalorder %s101, %s103
    %p107 = scmp.eq.s32.totalorder %s13, 0
    %p108 = por %p106, %p107
    %p109 = scmp.ne.s32.totalorder %s101, %s103
    %p110 = scmp.eq.s32.totalorder %s18, 1
    %p111 = por %p109, %p110
    %p112 = scmp.ne.s32.totalorder %s103, %s104
    %p113 = scmp.eq.s32.totalorder %s18, 0
    %p114 = por %p112, %p113
    %p115 = scmp.ne.s32.totalorder %s103, %s104
    %p116 = scmp.eq.s32.totalorder %s19, 1
    %p117 = por %p115, %p116
    %p119 = scmp.ne.s32.totalorder %s104, %s118
    %p120 = scmp.eq.s32.totalorder %s19, 0
    %p121 = por %p119, %p120
    %s123 = sadd.s32 %s122, 1
    %p126 = scmp.eq.s32.totalorder %s13, 1
    %p127 = scmp.ne.s32.totalorder %s122, %s124
    %p128 = scmp.eq.s32.totalorder %s13, 0
    %p129 = por %p127, %p128
    %p130 = scmp.ne.s32.totalorder %s122, %s124
    %p131 = scmp.eq.s32.totalorder %s18, 1
    %p132 = por %p130, %p131
    %p133 = scmp.ne.s32.totalorder %s124, %s125
    %p134 = scmp.eq.s32.totalorder %s18, 0
    %p135 = por %p133, %p134
    %p136 = scmp.ne.s32.totalorder %s124, %s125
    %p137 = scmp.eq.s32.totalorder %s19, 1
    %p138 = por %p136, %p137
    %p140 = scmp.ne.s32.totalorder %s125, %s139
    %p141 = scmp.eq.s32.totalorder %s19, 0
    %p142 = por %p140, %p141
    %s144 = sadd.s32 %s143, 1
    %p147 = scmp.eq.s32.totalorder %s13, 1
    %p148 = scmp.ne.s32.totalorder %s143, %s145
    %p149 = scmp.eq.s32.totalorder %s13, 0
    %p150 = por %p148, %p149
    %p151 = scmp.ne.s32.totalorder %s143, %s145
    %p152 = scmp.eq.s32.totalorder %s18, 1
    %p153 = por %p151, %p152
    %p154 = scmp.ne.s32.totalorder %s145, %s146
    %p155 = scmp.eq.s32.totalorder %s18, 0
    %p156 = por %p154, %p155
    %p157 = scmp.ne.s32.totalorder %s145, %s146
    %p158 = scmp.eq.s32.totalorder %s19, 1
    %p159 = por %p157, %p158
    %p161 = scmp.ne.s32.totalorder %s146, %s160
    %p162 = scmp.eq.s32.totalorder %s19, 0
    %p163 = por %p161, %p162
    %s165 = sadd.s32 %s164, 1
    %p168 = scmp.eq.s32.totalorder %s13, 1
    %p169 = scmp.ne.s32.totalorder %s164, %s166
    %p170 = scmp.eq.s32.totalorder %s13, 0
    %p171 = por %p169, %p170
    %p172 = scmp.ne.s32.totalorder %s164, %s166
    %p173 = scmp.eq.s32.totalorder %s18, 1
    %p174 = por %p172, %p173
    %p175 = scmp.ne.s32.totalorder %s166, %s167
    %p176 = scmp.eq.s32.totalorder %s18, 0
    %p177 = por %p175, %p176
    %p178 = scmp.ne.s32.totalorder %s166, %s167
    %p179 = scmp.eq.s32.totalorder %s19, 1
    %p180 = por %p178, %p179
    %p182 = scmp.ne.s32.totalorder %s167, %s181
    %p183 = scmp.eq.s32.totalorder %s19, 0
    %p184 = por %p182, %p183
    %s185 = ssub.s32 %s20, %s32
    %s186 = ssub.s32 %s21, %s28
    %s187 = sor.u32 %s185, %s186
    %p188 = scmp.eq.s32.totalorder %s187, 0
    %s190 = sadd.s32 %s189, 1
    %s191 = scalar_select %p188, %s189, %s190
    %p194 = pneg %p188
    %p195 = scmp.eq.s32.totalorder %s13, 1
    %p196 = por %p194, %p195
    %p197 = scmp.ne.s32.totalorder %s189, %s192
    %p198 = scmp.eq.s32.totalorder %s13, 0
    %p199 = por %p197, %p198
    %p200 = scmp.ne.s32.totalorder %s189, %s192
    %p201 = scmp.eq.s32.totalorder %s18, 1
    %p202 = por %p200, %p201
    %p203 = scmp.ne.s32.totalorder %s192, %s193
    %p204 = scmp.eq.s32.totalorder %s18, 0
    %p205 = por %p203, %p204
    %p206 = scmp.ne.s32.totalorder %s192, %s193
    %p207 = scmp.eq.s32.totalorder %s19, 1
    %p208 = por %p206, %p207
    %p210 = scmp.ne.s32.totalorder %s193, %s209
    %p211 = scmp.eq.s32.totalorder %s19, 0
    %p212 = por %p210, %p211
    %p213 = scmp.le.s32.totalorder 1, %s13
    %p214 = scmp.lt.s32.totalorder %s13, 3
    %p215 = pnand %p213, %p214
    %p216 = pneg %p215
    // Predicated region
    $region9: #{tpu_custom_call.1} parent=5 // pred_check
      _
    $region10: #{tpu_custom_call.1} parent=5 // pred_check_branch
      %218 = sbr.rel (%p215) target = $region12
    $region11: #{tpu_custom_call.1} parent=5 // pred_region
      %s219 = ssub.s32 %s13, 1
      // Predicated region
      $region13: #{tpu_custom_call.1} parent=11 // pred_check
        %p220 = pneg %p72
      $region14: #{tpu_custom_call.1} parent=11 // pred_check_branch
        %222 = sbr.rel (%p220) target = $region16
      $region15: #{tpu_custom_call.1} parent=11 // pred_region
        _
      $region16: #{tpu_custom_call.1} parent=11 // pred_fallthru
        _
      // Predicated region
      $region17: #{tpu_custom_call.1} parent=11 // pred_check
        %p223 = pneg %p93
      $region18: #{tpu_custom_call.1} parent=11 // pred_check_branch
        %225 = sbr.rel (%p223) target = $region20
      $region19: #{tpu_custom_call.1} parent=11 // pred_region
        _
      $region20: #{tpu_custom_call.1} parent=11 // pred_fallthru
        _
      // Predicated region
      $region21: #{tpu_custom_call.1} parent=11 // pred_check
        %p226 = pneg %p114
      $region22: #{tpu_custom_call.1} parent=11 // pred_check_branch
        %228 = sbr.rel (%p226) target = $region24
      $region23: #{tpu_custom_call.1} parent=11 // pred_region
        _
      $region24: #{tpu_custom_call.1} parent=11 // pred_fallthru
        _
      // Predicated region
      $region25: #{tpu_custom_call.1} parent=11 // pred_check
        %p229 = pneg %p135
      $region26: #{tpu_custom_call.1} parent=11 // pred_check_branch
        %231 = sbr.rel (%p229) target = $region28
      $region27: #{tpu_custom_call.1} parent=11 // pred_region
        _
      $region28: #{tpu_custom_call.1} parent=11 // pred_fallthru
        _
      // Predicated region
      $region29: #{tpu_custom_call.1} parent=11 // pred_check
        %p232 = pneg %p156
      $region30: #{tpu_custom_call.1} parent=11 // pred_check_branch
        %234 = sbr.rel (%p232) target = $region32
      $region31: #{tpu_custom_call.1} parent=11 // pred_region
        _
      $region32: #{tpu_custom_call.1} parent=11 // pred_fallthru
        _
      // Predicated region
      $region33: #{tpu_custom_call.1} parent=11 // pred_check
        %p235 = pneg %p177
      $region34: #{tpu_custom_call.1} parent=11 // pred_check_branch
        %237 = sbr.rel (%p235) target = $region36
      $region35: #{tpu_custom_call.1} parent=11 // pred_region
        _
      $region36: #{tpu_custom_call.1} parent=11 // pred_fallthru
        _
    $region12: #{tpu_custom_call.1} parent=5 // pred_fallthru
      _
    %p238 = scmp.lt.s32.totalorder %s13, 2
    // Predicated region
    $region37: #{tpu_custom_call.1} parent=5 // pred_check
      %p239 = pneg %p238
    $region38: #{tpu_custom_call.1} parent=5 // pred_check_branch
      %241 = sbr.rel (%p239) target = $region40
    $region39: #{tpu_custom_call.1} parent=5 // pred_region
      // Predicated region
      $region41: #{tpu_custom_call.1} parent=39 // pred_check
        %p242 = pneg %p45
      $region42: #{tpu_custom_call.1} parent=39 // pred_check_branch
        %244 = sbr.rel (%p242) target = $region44
      $region43: #{tpu_custom_call.1} parent=39 // pred_region
        %p245 = scmp.lt.s32.totalorder %s20, 1
        %s246 = scalar_select %p245, %s20, 1
        %s247 = smul.addr %s246, 32
        %s248 = smul.addr %s247, 8
        %s249 = scalar_lea.vmem %s0, %s248
      $region44: #{tpu_custom_call.1} parent=39 // pred_fallthru
        _
    $region40: #{tpu_custom_call.1} parent=5 // pred_fallthru
      _
    %p250 = scmp.le.s32.totalorder 1, %s13
    %p251 = scmp.lt.s32.totalorder %s13, 3
    %p252 = pnand %p250, %p251
    %p253 = pneg %p252
    // Predicated region
    $region45: #{tpu_custom_call.1} parent=5 // pred_check
      _
    $region46: #{tpu_custom_call.1} parent=5 // pred_check_branch
      %255 = sbr.rel (%p252) target = $region48
    $region47: #{tpu_custom_call.1} parent=5 // pred_region
      %s256 = ssub.s32 %s13, 1
      %p257 = scmp.lt.s32.totalorder %s22, 1
      %s258 = scalar_select %p257, %s22, 1
      %s259 = smul.addr %s258, 32
      %s260 = smul.addr %s259, 8
      %s261 = scalar_lea.vmem %s0, %s260
      %p262 = pneg %p51
      %p263 = pneg %p48
      %p264 = pneg %p72
      %p265 = pneg %p69
      %p266 = pneg %p93
      %p267 = pneg %p90
      %p268 = pneg %p114
      %p269 = pneg %p111
      %p270 = pneg %p135
      %p271 = pneg %p132
      %p272 = pneg %p156
      %p273 = pneg %p153
      %p274 = pneg %p177
      %p275 = pneg %p174
      %p276 = pneg %p205
      %p277 = pneg %p202
      %s278 = smul.u32 16, %s23
      %p279 = scmp.lt.s32.totalorder %s22, 1
      %s280 = scalar_select %p279, %s22, 1
      %p281 = scmp.lt.s32.totalorder %s278, 15
      %s282 = scalar_select %p281, %s278, 15
      %s283 = smul.addr %s282, 2
      %s284 = smul.addr %s280, 32
      %s285 = sadd.s32 %s283, %s284
      %s286 = smul.addr %s285, 8
      %s287 = scalar_lea.vmem %s7, %s286
      %p288 = scmp.lt.s32.totalorder %s22, 1
      %s289 = scalar_select %p288, %s22, 1
      %s290 = smul.addr %s289, 32
      %s291 = smul.addr %s290, 8
      %s292 = scalar_lea.vmem %s0, %s291
      %s293 = smul.u32 16, %s23
      %p294 = scmp.lt.s32.totalorder %s22, 1
      %s295 = scalar_select %p294, %s22, 1
      %p296 = scmp.lt.s32.totalorder %s293, 15
      %s297 = scalar_select %p296, %s293, 15
      %s298 = smul.addr %s297, 2
      %s299 = smul.addr %s295, 32
      %s300 = sadd.s32 %s298, %s299
      %s301 = smul.addr %s300, 8
      %s302 = scalar_lea.vmem %s7, %s301
      %s303 = smul.u32 16, %s23
      %s304 = smul.u32 %s23, 16
      %s305 = ssub.s32 %s304, 1
      %p306 = scmp.gt.s32.totalorder %s305, 0
      %s307 = scalar_select %p306, %s305, 0
      %s308 = smul.u32 %s307, 16
      %s309 = scalar_lea.vmem %s292, %s308
      %v310 = vld [vmem:[%s309] sm:$0xff]
      %v311 = vld [vmem:[%s309 + $0x8] sm:$0xff]
      %s312 = smul.u32 %s304, 16
      %s313 = scalar_lea.vmem %s292, %s312
      %v314 = vld [vmem:[%s313] sm:$0xff]
      %v315 = vld [vmem:[%s313 + $0x8] sm:$0xff]
      %v316 = vld [vmem:[%s313 + $0x10] sm:$0xff]
      %v317 = vld [vmem:[%s313 + $0x18] sm:$0xff]
      %v318 = vld [vmem:[%s313 + $0x20] sm:$0xff]
      %v319 = vld [vmem:[%s313 + $0x28] sm:$0xff]
      %v320 = vld [vmem:[%s313 + $0x30] sm:$0xff]
      %v321 = vld [vmem:[%s313 + $0x38] sm:$0xff]
      %v322 = vld [vmem:[%s313 + $0x40] sm:$0xff]
      %v323 = vld [vmem:[%s313 + $0x48] sm:$0xff]
      %v324 = vld [vmem:[%s313 + $0x50] sm:$0xff]
      %v325 = vld [vmem:[%s313 + $0x58] sm:$0xff]
      %v326 = vld [vmem:[%s313 + $0x60] sm:$0xff]
      %v327 = vld [vmem:[%s313 + $0x68] sm:$0xff]
      %v328 = vld [vmem:[%s313 + $0x70] sm:$0xff]
      %v329 = vld [vmem:[%s313 + $0x78] sm:$0xff]
      %v330 = vld [vmem:[%s313 + $0x80] sm:$0xff]
      %v331 = vld [vmem:[%s313 + $0x88] sm:$0xff]
      %v332 = vld [vmem:[%s313 + $0x90] sm:$0xff]
      %v333 = vld [vmem:[%s313 + $0x98] sm:$0xff]
      %v334 = vld [vmem:[%s313 + $0xa0] sm:$0xff]
      %v335 = vld [vmem:[%s313 + $0xa8] sm:$0xff]
      %v336 = vld [vmem:[%s313 + $0xb0] sm:$0xff]
      %v337 = vld [vmem:[%s313 + $0xb8] sm:$0xff]
      %v338 = vld [vmem:[%s313 + $0xc0] sm:$0xff]
      %v339 = vld [vmem:[%s313 + $0xc8] sm:$0xff]
      %v340 = vld [vmem:[%s313 + $0xd0] sm:$0xff]
      %v341 = vld [vmem:[%s313 + $0xd8] sm:$0xff]
      %v342 = vld [vmem:[%s313 + $0xe0] sm:$0xff]
      %v343 = vld [vmem:[%s313 + $0xe8] sm:$0xff]
      %v344 = vld [vmem:[%s313 + $0xf0] sm:$0xff]
      %v345 = vld [vmem:[%s313 + $0xf8] sm:$0xff]
      %s346 = sadd.s32 %s304, 16
      %p347 = scmp.lt.s32.totalorder %s346, 15
      %s348 = scalar_select %p347, %s346, 15
      %s349 = smul.u32 %s348, 16
      %s350 = scalar_lea.vmem %s292, %s349
      %v351 = vld [vmem:[%s350] sm:$0xff]
      %v352 = vld [vmem:[%s350 + $0x8] sm:$0xff]
      %v353 = vld [vmem:[%s1] sm:$0xf]
      %v354 = vld [vmem:[%s2] sm:$0x1]
      %v356 = vlaneseq
      %v357 = vshrl.u32 %v356, 7
      %v358 = vsub.s32 0, %v357
      %v359 = vrot.slane %v354, %v358
      %vm361 = vcmask 31744
      %v363 = vsel %vm361, %v310, 0
      %v366 = vsel %vm361, %v311, 0
      %v369 = vsel %vm361, %v314, 0
      %v372 = vsel %vm361, %v315, 0
      %v375 = vsel %vm361, %v316, 0
      %v378 = vsel %vm361, %v317, 0
      %v381 = vsel %vm361, %v318, 0
      %v384 = vsel %vm361, %v319, 0
      %v387 = vsel %vm361, %v320, 0
      %v390 = vsel %vm361, %v321, 0
      %v393 = vsel %vm361, %v322, 0
      %v396 = vsel %vm361, %v323, 0
      %v399 = vsel %vm361, %v324, 0
      %v402 = vsel %vm361, %v325, 0
      %v405 = vsel %vm361, %v326, 0
      %v408 = vsel %vm361, %v327, 0
      %v411 = vsel %vm361, %v328, 0
      %v414 = vsel %vm361, %v329, 0
      %v417 = vsel %vm361, %v330, 0
      %v420 = vsel %vm361, %v331, 0
      %v423 = vsel %vm361, %v332, 0
      %v426 = vsel %vm361, %v333, 0
      %v429 = vsel %vm361, %v334, 0
      %v432 = vsel %vm361, %v335, 0
      %v435 = vsel %vm361, %v336, 0
      %v438 = vsel %vm361, %v337, 0
      %v441 = vsel %vm361, %v338, 0
      %v444 = vsel %vm361, %v339, 0
      %v447 = vsel %vm361, %v340, 0
      %v450 = vsel %vm361, %v341, 0
      %v453 = vsel %vm361, %v342, 0
      %v456 = vsel %vm361, %v343, 0
      %v459 = vsel %vm361, %v344, 0
      %v462 = vsel %vm361, %v345, 0
      %v465 = vsel %vm361, %v351, 0
      %v468 = vsel %vm361, %v352, 0
      %vm470 = vcmask 1043456
      %v472 = vsel %vm470, %v353, 0
      %474 = vmatprep.subr.mxu0 0.0
      %475 = vmatpush1.msra.mxu0 %v472
      %476 = vmatprep.subr.mxu0 0.0
      %477 = vmatpush1.msra.mxu0 0.0
      %478 = vmatprep.subr.mxu0 0.0
      %479 = vmatpush1.msra.mxu0 0.0
      %480 = vmatprep.subr.mxu0 0.0
      %481 = vmatpush1.msra.mxu0 0.0
      %482 = vmatprep.subr.mxu0 0.0
      %483 = vmatpush1.msra.mxu0 0.0
      %484 = vmatprep.subr.mxu0 0.0
      %485 = vmatpush1.msra.mxu0 0.0
      %486 = vmatprep.subr.mxu0 0.0
      %487 = vmatpush1.msra.mxu0 0.0
      %488 = vmatprep.subr.mxu0 0.0
      %489 = vmatpush1.msra.mxu0 0.0
      %490 = vmatprep.subr.mxu0 0.0
      %491 = vmatpush1.msra.mxu0 0.0
      %492 = vmatprep.subr.mxu0 0.0
      %493 = vmatpush1.msra.mxu0 0.0
      %494 = vmatprep.subr.mxu0 0.0
      %495 = vmatpush1.msra.mxu0 0.0
      %496 = vmatprep.subr.mxu0 0.0
      %497 = vmatpush1.msra.mxu0 0.0
      %498 = vmatprep.subr.mxu0 0.0
      %499 = vmatpush1.msra.mxu0 0.0
      %500 = vmatprep.subr.mxu0 0.0
      %501 = vmatpush1.msra.mxu0 0.0
      %502 = vmatprep.subr.mxu0 0.0
      %503 = vmatpush1.msra.mxu0 0.0
      %504 = vmatprep.subr.mxu0 0.0
      %505 = vmatpush1.msra.mxu0 0.0
      %506 = vmatprep.subr.mxu0 0.0
      %507 = vmatpush1.msra.mxu0 0.0
      %508 = vmatprep.subr.mxu0 0.0
      %509 = vmatpush1.msra.mxu0 0.0
      %510 = vmatprep.subr.mxu0 0.0
      %511 = vmatpush1.msra.mxu0 0.0
      %512 = vmatprep.subr.mxu0 0.0
      %513 = vmatpush1.msra.mxu0 0.0
      %514 = vmatprep.subr.mxu0 0.0
      %515 = vmatpush1.msra.mxu0 0.0
      %516 = vmatprep.subr.mxu0 0.0
      %517 = vmatpush1.msra.mxu0 0.0
      %518 = vmatprep.subr.mxu0 0.0
      %519 = vmatpush1.msra.mxu0 0.0
      %520 = vmatprep.subr.mxu0 0.0
      %521 = vmatpush1.msra.mxu0 0.0
      %522 = vmatprep.subr.mxu0 0.0
      %523 = vmatpush1.msra.mxu0 0.0
      %524 = vmatprep.subr.mxu0 0.0
      %525 = vmatpush1.msra.mxu0 0.0
      %526 = vmatprep.subr.mxu0 0.0
      %527 = vmatpush1.msra.mxu0 0.0
      %528 = vmatprep.subr.mxu0 0.0
      %529 = vmatpush1.msra.mxu0 0.0
      %530 = vmatprep.subr.mxu0 0.0
      %531 = vmatpush1.msra.mxu0 0.0
      %532 = vmatprep.subr.mxu0 0.0
      %533 = vmatpush1.msra.mxu0 0.0
      %534 = vmatprep.subr.mxu0 0.0
      %535 = vmatpush1.msra.mxu0 0.0
      %536 = vmatprep.subr.mxu0 0.0
      %537 = vmatpush1.msra.mxu0 0.0
      %538 = vmatprep.mubr.f32.mxu0 0.0
      %539 = vmatmul.mubr.f32.gmra.mrb[0].mxu0 %v363
      %v540 = vpop.f32.mrb[0].mxu0
      %v541 = vadd.f32 %v359, %v540
      %v542 = vpop.f32.mrb[0].mxu0
      %543 = vmatprep.mubr.f32.mxu0 0.0
      %544 = vmatmul.mubr.f32.gmra.mrb[0].mxu0 %v366
      %v545 = vpop.f32.mrb[0].mxu0
      %v546 = vadd.f32 %v359, %v545
      %v547 = vpop.f32.mrb[0].mxu0
      %548 = vmatprep.mubr.f32.mxu0 0.0
      %549 = vmatmul.mubr.f32.gmra.mrb[0].mxu0 %v369
      %v550 = vpop.f32.mrb[0].mxu0
      %v551 = vadd.f32 %v359, %v550
      %v552 = vpop.f32.mrb[0].mxu0
      %553 = vmatprep.mubr.f32.mxu0 0.0
      %554 = vmatmul.mubr.f32.gmra.mrb[0].mxu0 %v372
      %v555 = vpop.f32.mrb[0].mxu0
      %v556 = vadd.f32 %v359, %v555
      %v557 = vpop.f32.mrb[0].mxu0
      %558 = vmatprep.mubr.f32.mxu0 0.0
      %559 = vmatmul.mubr.f32.gmra.mrb[0].mxu0 %v375
      %v560 = vpop.f32.mrb[0].mxu0
      %v561 = vadd.f32 %v359, %v560
      %v562 = vpop.f32.mrb[0].mxu0
      %563 = vmatprep.mubr.f32.mxu0 0.0
      %564 = vmatmul.mubr.f32.gmra.mrb[0].mxu0 %v378
      %v565 = vpop.f32.mrb[0].mxu0
      %v566 = vadd.f32 %v359, %v565
      %v567 = vpop.f32.mrb[0].mxu0
      %568 = vmatprep.mubr.f32.mxu0 0.0
      %569 = vmatmul.mubr.f32.gmra.mrb[0].mxu0 %v381
      %v570 = vpop.f32.mrb[0].mxu0
      %v571 = vadd.f32 %v359, %v570
      %v572 = vpop.f32.mrb[0].mxu0
      %573 = vmatprep.mubr.f32.mxu0 0.0
      %574 = vmatmul.mubr.f32.gmra.mrb[0].mxu0 %v384
      %v575 = vpop.f32.mrb[0].mxu0
      %v576 = vadd.f32 %v359, %v575
      %v577 = vpop.f32.mrb[0].mxu0
      %578 = vmatprep.mubr.f32.mxu0 0.0
      %579 = vmatmul.mubr.f32.gmra.mrb[0].mxu0 %v387
      %v580 = vpop.f32.mrb[0].mxu0
      %v581 = vadd.f32 %v359, %v580
      %v582 = vpop.f32.mrb[0].mxu0
      %583 = vmatprep.mubr.f32.mxu0 0.0
      %584 = vmatmul.mubr.f32.gmra.mrb[0].mxu0 %v390
      %v585 = vpop.f32.mrb[0].mxu0
      %v586 = vadd.f32 %v359, %v585
      %v587 = vpop.f32.mrb[0].mxu0
      %588 = vmatprep.mubr.f32.mxu0 0.0
      %589 = vmatmul.mubr.f32.gmra.mrb[0].mxu0 %v393
      %v590 = vpop.f32.mrb[0].mxu0
      %v591 = vadd.f32 %v359, %v590
      %v592 = vpop.f32.mrb[0].mxu0
      %593 = vmatprep.mubr.f32.mxu0 0.0
      %594 = vmatmul.mubr.f32.gmra.mrb[0].mxu0 %v396
      %v595 = vpop.f32.mrb[0].mxu0
      %v596 = vadd.f32 %v359, %v595
      %v597 = vpop.f32.mrb[0].mxu0
      %598 = vmatprep.mubr.f32.mxu0 0.0
      %599 = vmatmul.mubr.f32.gmra.mrb[0].mxu0 %v399
      %v600 = vpop.f32.mrb[0].mxu0
      %v601 = vadd.f32 %v359, %v600
      %v602 = vpop.f32.mrb[0].mxu0
      %603 = vmatprep.mubr.f32.mxu0 0.0
      %604 = vmatmul.mubr.f32.gmra.mrb[0].mxu0 %v402
      %v605 = vpop.f32.mrb[0].mxu0
      %v606 = vadd.f32 %v359, %v605
      %v607 = vpop.f32.mrb[0].mxu0
      %608 = vmatprep.mubr.f32.mxu0 0.0
      %609 = vmatmul.mubr.f32.gmra.mrb[0].mxu0 %v405
      %v610 = vpop.f32.mrb[0].mxu0
      %v611 = vadd.f32 %v359, %v610
      %v612 = vpop.f32.mrb[0].mxu0
      %613 = vmatprep.mubr.f32.mxu0 0.0
      %614 = vmatmul.mubr.f32.gmra.mrb[0].mxu0 %v408
      %v615 = vpop.f32.mrb[0].mxu0
      %v616 = vadd.f32 %v359, %v615
      %v617 = vpop.f32.mrb[0].mxu0
      %618 = vmatprep.mubr.f32.mxu0 0.0
      %619 = vmatmul.mubr.f32.gmra.mrb[0].mxu0 %v411
      %v620 = vpop.f32.mrb[0].mxu0
      %v621 = vadd.f32 %v359, %v620
      %v622 = vpop.f32.mrb[0].mxu0
      %623 = vmatprep.mubr.f32.mxu0 0.0
      %624 = vmatmul.mubr.f32.gmra.mrb[0].mxu0 %v414
      %v625 = vpop.f32.mrb[0].mxu0
      %v626 = vadd.f32 %v359, %v625
      %v627 = vpop.f32.mrb[0].mxu0
      %628 = vmatprep.mubr.f32.mxu0 0.0
      %629 = vmatmul.mubr.f32.gmra.mrb[0].mxu0 %v417
      %v630 = vpop.f32.mrb[0].mxu0
      %v631 = vadd.f32 %v359, %v630
      %v632 = vpop.f32.mrb[0].mxu0
      %633 = vmatprep.mubr.f32.mxu0 0.0
      %634 = vmatmul.mubr.f32.gmra.mrb[0].mxu0 %v420
      %v635 = vpop.f32.mrb[0].mxu0
      %v636 = vadd.f32 %v359, %v635
      %v637 = vpop.f32.mrb[0].mxu0
      %638 = vmatprep.mubr.f32.mxu0 0.0
      %639 = vmatmul.mubr.f32.gmra.mrb[0].mxu0 %v423
      %v640 = vpop.f32.mrb[0].mxu0
      %v641 = vadd.f32 %v359, %v640
      %v642 = vpop.f32.mrb[0].mxu0
      %643 = vmatprep.mubr.f32.mxu0 0.0
      %644 = vmatmul.mubr.f32.gmra.mrb[0].mxu0 %v426
      %v645 = vpop.f32.mrb[0].mxu0
      %v646 = vadd.f32 %v359, %v645
      %v647 = vpop.f32.mrb[0].mxu0
      %648 = vmatprep.mubr.f32.mxu0 0.0
      %649 = vmatmul.mubr.f32.gmra.mrb[0].mxu0 %v429
      %v650 = vpop.f32.mrb[0].mxu0
      %v651 = vadd.f32 %v359, %v650
      %v652 = vpop.f32.mrb[0].mxu0
      %653 = vmatprep.mubr.f32.mxu0 0.0
      %654 = vmatmul.mubr.f32.gmra.mrb[0].mxu0 %v432
      %v655 = vpop.f32.mrb[0].mxu0
      %v656 = vadd.f32 %v359, %v655
      %v657 = vpop.f32.mrb[0].mxu0
      %658 = vmatprep.mubr.f32.mxu0 0.0
      %659 = vmatmul.mubr.f32.gmra.mrb[0].mxu0 %v435
      %v660 = vpop.f32.mrb[0].mxu0
      %v661 = vadd.f32 %v359, %v660
      %v662 = vpop.f32.mrb[0].mxu0
      %663 = vmatprep.mubr.f32.mxu0 0.0
      %664 = vmatmul.mubr.f32.gmra.mrb[0].mxu0 %v438
      %v665 = vpop.f32.mrb[0].mxu0
      %v666 = vadd.f32 %v359, %v665
      %v667 = vpop.f32.mrb[0].mxu0
      %668 = vmatprep.mubr.f32.mxu0 0.0
      %669 = vmatmul.mubr.f32.gmra.mrb[0].mxu0 %v441
      %v670 = vpop.f32.mrb[0].mxu0
      %v671 = vadd.f32 %v359, %v670
      %v672 = vpop.f32.mrb[0].mxu0
      %673 = vmatprep.mubr.f32.mxu0 0.0
      %674 = vmatmul.mubr.f32.gmra.mrb[0].mxu0 %v444
      %v675 = vpop.f32.mrb[0].mxu0
      %v676 = vadd.f32 %v359, %v675
      %v677 = vpop.f32.mrb[0].mxu0
      %678 = vmatprep.mubr.f32.mxu0 0.0
      %679 = vmatmul.mubr.f32.gmra.mrb[0].mxu0 %v447
      %v680 = vpop.f32.mrb[0].mxu0
      %v681 = vadd.f32 %v359, %v680
      %v682 = vpop.f32.mrb[0].mxu0
      %683 = vmatprep.mubr.f32.mxu0 0.0
      %684 = vmatmul.mubr.f32.gmra.mrb[0].mxu0 %v450
      %v685 = vpop.f32.mrb[0].mxu0
      %v686 = vadd.f32 %v359, %v685
      %v687 = vpop.f32.mrb[0].mxu0
      %688 = vmatprep.mubr.f32.mxu0 0.0
      %689 = vmatmul.mubr.f32.gmra.mrb[0].mxu0 %v453
      %v690 = vpop.f32.mrb[0].mxu0
      %v691 = vadd.f32 %v359, %v690
      %v692 = vpop.f32.mrb[0].mxu0
      %693 = vmatprep.mubr.f32.mxu0 0.0
      %694 = vmatmul.mubr.f32.gmra.mrb[0].mxu0 %v456
      %v695 = vpop.f32.mrb[0].mxu0
      %v696 = vadd.f32 %v359, %v695
      %v697 = vpop.f32.mrb[0].mxu0
      %698 = vmatprep.mubr.f32.mxu0 0.0
      %699 = vmatmul.mubr.f32.gmra.mrb[0].mxu0 %v459
      %v700 = vpop.f32.mrb[0].mxu0
      %v701 = vadd.f32 %v359, %v700
      %v702 = vpop.f32.mrb[0].mxu0
      %703 = vmatprep.mubr.f32.mxu0 0.0
      %704 = vmatmul.mubr.f32.gmra.mrb[0].mxu0 %v462
      %v705 = vpop.f32.mrb[0].mxu0
      %v706 = vadd.f32 %v359, %v705
      %v707 = vpop.f32.mrb[0].mxu0
      %708 = vmatprep.mubr.f32.mxu0 0.0
      %709 = vmatmul.mubr.f32.gmra.mrb[0].mxu0 %v465
      %v710 = vpop.f32.mrb[0].mxu0
      %v711 = vadd.f32 %v359, %v710
      %v712 = vpop.f32.mrb[0].mxu0
      %713 = vmatprep.mubr.f32.mxu0 0.0
      %714 = vmatmul.mubr.f32.gmra.mrb[0].mxu0 %v468
      %v715 = vpop.f32.mrb[0].mxu0
      %v716 = vadd.f32 %v359, %v715
      %v717 = vpop.f32.mrb[0].mxu0
      %718 = vdwg.mxu0
      %v719 = vmax.f32 %v541, 0.0
      %v720 = vmax.f32 %v546, 0.0
      %v721 = vmax.f32 %v551, 0.0
      %v722 = vmax.f32 %v556, 0.0
      %v723 = vmax.f32 %v561, 0.0
      %v724 = vmax.f32 %v566, 0.0
      %v725 = vmax.f32 %v571, 0.0
      %v726 = vmax.f32 %v576, 0.0
      %v727 = vmax.f32 %v581, 0.0
      %v728 = vmax.f32 %v586, 0.0
      %v729 = vmax.f32 %v591, 0.0
      %v730 = vmax.f32 %v596, 0.0
      %v731 = vmax.f32 %v601, 0.0
      %v732 = vmax.f32 %v606, 0.0
      %v733 = vmax.f32 %v611, 0.0
      %v734 = vmax.f32 %v616, 0.0
      %v735 = vmax.f32 %v621, 0.0
      %v736 = vmax.f32 %v626, 0.0
      %v737 = vmax.f32 %v631, 0.0
      %v738 = vmax.f32 %v636, 0.0
      %v739 = vmax.f32 %v641, 0.0
      %v740 = vmax.f32 %v646, 0.0
      %v741 = vmax.f32 %v651, 0.0
      %v742 = vmax.f32 %v656, 0.0
      %v743 = vmax.f32 %v661, 0.0
      %v744 = vmax.f32 %v666, 0.0
      %v745 = vmax.f32 %v671, 0.0
      %v746 = vmax.f32 %v676, 0.0
      %v747 = vmax.f32 %v681, 0.0
      %v748 = vmax.f32 %v686, 0.0
      %v749 = vmax.f32 %v691, 0.0
      %v750 = vmax.f32 %v696, 0.0
      %v751 = vmax.f32 %v701, 0.0
      %v752 = vmax.f32 %v706, 0.0
      %v753 = vmax.f32 %v711, 0.0
      %v754 = vmax.f32 %v716, 0.0
      %v755 = vmin.f32 %v719, 6.0
      %v756 = vmin.f32 %v720, 6.0
      %v757 = vmin.f32 %v721, 6.0
      %v758 = vmin.f32 %v722, 6.0
      %v759 = vmin.f32 %v723, 6.0
      %v760 = vmin.f32 %v724, 6.0
      %v761 = vmin.f32 %v725, 6.0
      %v762 = vmin.f32 %v726, 6.0
      %v763 = vmin.f32 %v727, 6.0
      %v764 = vmin.f32 %v728, 6.0
      %v765 = vmin.f32 %v729, 6.0
      %v766 = vmin.f32 %v730, 6.0
      %v767 = vmin.f32 %v731, 6.0
      %v768 = vmin.f32 %v732, 6.0
      %v769 = vmin.f32 %v733, 6.0
      %v770 = vmin.f32 %v734, 6.0
      %v771 = vmin.f32 %v735, 6.0
      %v772 = vmin.f32 %v736, 6.0
      %v773 = vmin.f32 %v737, 6.0
      %v774 = vmin.f32 %v738, 6.0
      %v775 = vmin.f32 %v739, 6.0
      %v776 = vmin.f32 %v740, 6.0
      %v777 = vmin.f32 %v741, 6.0
      %v778 = vmin.f32 %v742, 6.0
      %v779 = vmin.f32 %v743, 6.0
      %v780 = vmin.f32 %v744, 6.0
      %v781 = vmin.f32 %v745, 6.0
      %v782 = vmin.f32 %v746, 6.0
      %v783 = vmin.f32 %v747, 6.0
      %v784 = vmin.f32 %v748, 6.0
      %v785 = vmin.f32 %v749, 6.0
      %v786 = vmin.f32 %v750, 6.0
      %v787 = vmin.f32 %v751, 6.0
      %v788 = vmin.f32 %v752, 6.0
      %v789 = vmin.f32 %v753, 6.0
      %v790 = vmin.f32 %v754, 6.0
      %vm791 = vcmask 188416
      %792 = vst.msk [vmem:[#allocation2 + $0x7] sm:$0x1] %vm791, 0.0
      %793 = vst.msk [vmem:[#allocation2 + $0x27] sm:$0x1] %vm791, 0.0
      %794 = vst.msk [vmem:[#allocation2 + $0x47] sm:$0x1] %vm791, 0.0
      %795 = vst.msk [vmem:[#allocation2 + $0x67] sm:$0x1] %vm791, 0.0
      %796 = vst.msk [vmem:[#allocation2 + $0x87] sm:$0x1] %vm791, 0.0
      %797 = vst.msk [vmem:[#allocation2 + $0xa7] sm:$0x1] %vm791, 0.0
      %798 = vst.msk [vmem:[#allocation2 + $0xc7] sm:$0x1] %vm791, 0.0
      %799 = vst.msk [vmem:[#allocation2 + $0xe7] sm:$0x1] %vm791, 0.0
      %800 = vst.msk [vmem:[#allocation2 + $0x107] sm:$0x1] %vm791, 0.0
      %801 = vst.msk [vmem:[#allocation2 + $0x127] sm:$0x1] %vm791, 0.0
      %802 = vst.msk [vmem:[#allocation2 + $0x147] sm:$0x1] %vm791, 0.0
      %803 = vst.msk [vmem:[#allocation2 + $0x167] sm:$0x1] %vm791, 0.0
      %804 = vst.msk [vmem:[#allocation2 + $0x187] sm:$0x1] %vm791, 0.0
      %805 = vst.msk [vmem:[#allocation2 + $0x1a7] sm:$0x1] %vm791, 0.0
      %806 = vst.msk [vmem:[#allocation2 + $0x1c7] sm:$0x1] %vm791, 0.0
      %807 = vst.msk [vmem:[#allocation2 + $0x1e7] sm:$0x1] %vm791, 0.0
      %808 = vst.msk [vmem:[#allocation2 + $0x207] sm:$0x1] %vm791, 0.0
      %809 = vst.msk [vmem:[#allocation2 + $0x227] sm:$0x1] %vm791, 0.0
      %810 = vst.msk [vmem:[#allocation2 + $0x18] sm:$0x1] %vm791, 0.0
      %811 = vst.msk [vmem:[#allocation2 + $0x38] sm:$0x1] %vm791, 0.0
      %812 = vst.msk [vmem:[#allocation2 + $0x58] sm:$0x1] %vm791, 0.0
      %813 = vst.msk [vmem:[#allocation2 + $0x78] sm:$0x1] %vm791, 0.0
      %814 = vst.msk [vmem:[#allocation2 + $0x98] sm:$0x1] %vm791, 0.0
      %815 = vst.msk [vmem:[#allocation2 + $0xb8] sm:$0x1] %vm791, 0.0
      %816 = vst.msk [vmem:[#allocation2 + $0xd8] sm:$0x1] %vm791, 0.0
      %817 = vst.msk [vmem:[#allocation2 + $0xf8] sm:$0x1] %vm791, 0.0
      %818 = vst.msk [vmem:[#allocation2 + $0x118] sm:$0x1] %vm791, 0.0
      %819 = vst.msk [vmem:[#allocation2 + $0x138] sm:$0x1] %vm791, 0.0
      %820 = vst.msk [vmem:[#allocation2 + $0x158] sm:$0x1] %vm791, 0.0
      %821 = vst.msk [vmem:[#allocation2 + $0x178] sm:$0x1] %vm791, 0.0
      %822 = vst.msk [vmem:[#allocation2 + $0x198] sm:$0x1] %vm791, 0.0
      %823 = vst.msk [vmem:[#allocation2 + $0x1b8] sm:$0x1] %vm791, 0.0
      %824 = vst.msk [vmem:[#allocation2 + $0x1d8] sm:$0x1] %vm791, 0.0
      %825 = vst.msk [vmem:[#allocation2 + $0x1f8] sm:$0x1] %vm791, 0.0
      %826 = vst.msk [vmem:[#allocation2 + $0x218] sm:$0x1] %vm791, 0.0
      %827 = vst.msk [vmem:[#allocation2 + $0x238] sm:$0x1] %vm791, 0.0
      %vm828 = vcmask 195584
      %829 = vst.msk [vmem:[#allocation2 + $0x8] sm:$0xff] %vm828, %v755
      %830 = vst.msk [vmem:[#allocation2 + $0x10] sm:$0xff] %vm828, %v756
      %831 = vst.msk [vmem:[#allocation2 + $0x28] sm:$0xff] %vm828, %v757
      %832 = vst.msk [vmem:[#allocation2 + $0x30] sm:$0xff] %vm828, %v758
      %833 = vst.msk [vmem:[#allocation2 + $0x48] sm:$0xff] %vm828, %v759
      %834 = vst.msk [vmem:[#allocation2 + $0x50] sm:$0xff] %vm828, %v760
      %835 = vst.msk [vmem:[#allocation2 + $0x68] sm:$0xff] %vm828, %v761
      %836 = vst.msk [vmem:[#allocation2 + $0x70] sm:$0xff] %vm828, %v762
      %837 = vst.msk [vmem:[#allocation2 + $0x88] sm:$0xff] %vm828, %v763
      %838 = vst.msk [vmem:[#allocation2 + $0x90] sm:$0xff] %vm828, %v764
      %839 = vst.msk [vmem:[#allocation2 + $0xa8] sm:$0xff] %vm828, %v765
      %840 = vst.msk [vmem:[#allocation2 + $0xb0] sm:$0xff] %vm828, %v766
      %841 = vst.msk [vmem:[#allocation2 + $0xc8] sm:$0xff] %vm828, %v767
      %842 = vst.msk [vmem:[#allocation2 + $0xd0] sm:$0xff] %vm828, %v768
      %843 = vst.msk [vmem:[#allocation2 + $0xe8] sm:$0xff] %vm828, %v769
      %844 = vst.msk [vmem:[#allocation2 + $0xf0] sm:$0xff] %vm828, %v770
      %845 = vst.msk [vmem:[#allocation2 + $0x108] sm:$0xff] %vm828, %v771
      %846 = vst.msk [vmem:[#allocation2 + $0x110] sm:$0xff] %vm828, %v772
      %847 = vst.msk [vmem:[#allocation2 + $0x128] sm:$0xff] %vm828, %v773
      %848 = vst.msk [vmem:[#allocation2 + $0x130] sm:$0xff] %vm828, %v774
      %849 = vst.msk [vmem:[#allocation2 + $0x148] sm:$0xff] %vm828, %v775
      %850 = vst.msk [vmem:[#allocation2 + $0x150] sm:$0xff] %vm828, %v776
      %851 = vst.msk [vmem:[#allocation2 + $0x168] sm:$0xff] %vm828, %v777
      %852 = vst.msk [vmem:[#allocation2 + $0x170] sm:$0xff] %vm828, %v778
      %853 = vst.msk [vmem:[#allocation2 + $0x188] sm:$0xff] %vm828, %v779
      %854 = vst.msk [vmem:[#allocation2 + $0x190] sm:$0xff] %vm828, %v780
      %855 = vst.msk [vmem:[#allocation2 + $0x1a8] sm:$0xff] %vm828, %v781
      %856 = vst.msk [vmem:[#allocation2 + $0x1b0] sm:$0xff] %vm828, %v782
      %857 = vst.msk [vmem:[#allocation2 + $0x1c8] sm:$0xff] %vm828, %v783
      %858 = vst.msk [vmem:[#allocation2 + $0x1d0] sm:$0xff] %vm828, %v784
      %859 = vst.msk [vmem:[#allocation2 + $0x1e8] sm:$0xff] %vm828, %v785
      %860 = vst.msk [vmem:[#allocation2 + $0x1f0] sm:$0xff] %vm828, %v786
      %861 = vst.msk [vmem:[#allocation2 + $0x208] sm:$0xff] %vm828, %v787
      %862 = vst.msk [vmem:[#allocation2 + $0x210] sm:$0xff] %vm828, %v788
      %863 = vst.msk [vmem:[#allocation2 + $0x228] sm:$0xff] %vm828, %v789
      %864 = vst.msk [vmem:[#allocation2 + $0x230] sm:$0xff] %vm828, %v790
      %p865 = scmp.eq.s32.totalorder %s23, 0
      // Predicated region
      $region49: #{tpu_custom_call.1} parent=47 // pred_check
        %p866 = pneg %p865
      $region50: #{tpu_custom_call.1} parent=47 // pred_check_branch
        %868 = sbr.rel (%p866) target = $region52
      $region51: #{tpu_custom_call.1} parent=47 // pred_region
        %869 = vst.msk [vmem:[#allocation2 + $0x8] sm:$0xff] %vm828, 0.0
        %870 = vst.msk [vmem:[#allocation2 + $0x10] sm:$0xff] %vm828, 0.0
        %s871 = scalar_lea.vmem [#allocation2], 544
        %872 = vst.msk [vmem:[%s871 + $0x8] sm:$0xff] %vm828, 0.0
        %873 = vst.msk [vmem:[%s871 + $0x10] sm:$0xff] %vm828, 0.0
      $region52: #{tpu_custom_call.1} parent=47 // pred_fallthru
        _
      %v874 = vld [vmem:[%s3] sm:$0x7]
      %v875 = vld [vmem:[%s3 + $0x4] sm:$0x7]
      %v876 = vld [vmem:[%s3 + $0x8] sm:$0x7]
      %v877 = vld [vmem:[#allocation2 + $0x7] sm:$0xff]
      %v878 = vld [vmem:[#allocation2 + $0xf] sm:$0xff]
      %v879 = vld [vmem:[#allocation2 + $0x27] sm:$0xff]
      %v880 = vld [vmem:[#allocation2 + $0x2f] sm:$0xff]
      %v881 = vld [vmem:[#allocation2 + $0x47] sm:$0xff]
      %v882 = vld [vmem:[#allocation2 + $0x4f] sm:$0xff]
      %v883 = vld [vmem:[#allocation2 + $0x67] sm:$0xff]
      %v884 = vld [vmem:[#allocation2 + $0x6f] sm:$0xff]
      %v885 = vld [vmem:[#allocation2 + $0x87] sm:$0xff]
      %v886 = vld [vmem:[#allocation2 + $0x8f] sm:$0xff]
      %v887 = vld [vmem:[#allocation2 + $0xa7] sm:$0xff]
      %v888 = vld [vmem:[#allocation2 + $0xaf] sm:$0xff]
      %v889 = vld [vmem:[#allocation2 + $0xc7] sm:$0xff]
      %v890 = vld [vmem:[#allocation2 + $0xcf] sm:$0xff]
      %v891 = vld [vmem:[#allocation2 + $0xe7] sm:$0xff]
      %v892 = vld [vmem:[#allocation2 + $0xef] sm:$0xff]
      %v893 = vld [vmem:[#allocation2 + $0x107] sm:$0xff]
      %v894 = vld [vmem:[#allocation2 + $0x10f] sm:$0xff]
      %v895 = vld [vmem:[#allocation2 + $0x127] sm:$0xff]
      %v896 = vld [vmem:[#allocation2 + $0x12f] sm:$0xff]
      %v897 = vld [vmem:[#allocation2 + $0x147] sm:$0xff]
      %v898 = vld [vmem:[#allocation2 + $0x14f] sm:$0xff]
      %v899 = vld [vmem:[#allocation2 + $0x167] sm:$0xff]
      %v900 = vld [vmem:[#allocation2 + $0x16f] sm:$0xff]
      %v901 = vld [vmem:[#allocation2 + $0x187] sm:$0xff]
      %v902 = vld [vmem:[#allocation2 + $0x18f] sm:$0xff]
      %v903 = vld [vmem:[#allocation2 + $0x1a7] sm:$0xff]
      %v904 = vld [vmem:[#allocation2 + $0x1af] sm:$0xff]
      %v905 = vld [vmem:[#allocation2 + $0x1c7] sm:$0xff]
      %v906 = vld [vmem:[#allocation2 + $0x1cf] sm:$0xff]
      %v907 = vld [vmem:[#allocation2 + $0x1e7] sm:$0xff]
      %v908 = vld [vmem:[#allocation2 + $0x1ef] sm:$0xff]
      %v909 = vld [vmem:[#allocation2 + $0x207] sm:$0xff]
      %v910 = vld [vmem:[#allocation2 + $0x20f] sm:$0xff]
      %v911 = vld [vmem:[#allocation2 + $0x227] sm:$0xff]
      %v912 = vld [vmem:[#allocation2 + $0x22f] sm:$0xff]
      %v913 = vlaneseq
      %v914 = vshrl.u32 %v913, 7
      %v915 = vsub.s32 0, %v914
      %v916 = vrot.slane %v874, %v915
      %v917 = vmul.f32 %v877, %v916
      %v918 = vmul.f32 %v878, %v916
      %v919 = vmul.f32 %v879, %v916
      %v920 = vmul.f32 %v880, %v916
      %v921 = vmul.f32 %v881, %v916
      %v922 = vmul.f32 %v882, %v916
      %v923 = vmul.f32 %v883, %v916
      %v924 = vmul.f32 %v884, %v916
      %v925 = vmul.f32 %v885, %v916
      %v926 = vmul.f32 %v886, %v916
      %v927 = vmul.f32 %v887, %v916
      %v928 = vmul.f32 %v888, %v916
      %v929 = vmul.f32 %v889, %v916
      %v930 = vmul.f32 %v890, %v916
      %v931 = vmul.f32 %v891, %v916
      %v932 = vmul.f32 %v892, %v916
      %v933 = vmul.f32 %v893, %v916
      %v934 = vmul.f32 %v894, %v916
      %v935 = vmul.f32 %v895, %v916
      %v936 = vmul.f32 %v896, %v916
      %v937 = vmul.f32 %v897, %v916
      %v938 = vmul.f32 %v898, %v916
      %v939 = vmul.f32 %v899, %v916
      %v940 = vmul.f32 %v900, %v916
      %v941 = vmul.f32 %v901, %v916
      %v942 = vmul.f32 %v902, %v916
      %v943 = vmul.f32 %v903, %v916
      %v944 = vmul.f32 %v904, %v916
      %v945 = vmul.f32 %v905, %v916
      %v946 = vmul.f32 %v906, %v916
      %v947 = vmul.f32 %v907, %v916
      %v948 = vmul.f32 %v908, %v916
      %v949 = vadd.f32 %v917, 0.0
      %v950 = vadd.f32 %v918, 0.0
      %v951 = vadd.f32 %v919, 0.0
      %v952 = vadd.f32 %v920, 0.0
      %v953 = vadd.f32 %v921, 0.0
      %v954 = vadd.f32 %v922, 0.0
      %v955 = vadd.f32 %v923, 0.0
      %v956 = vadd.f32 %v924, 0.0
      %v957 = vadd.f32 %v925, 0.0
      %v958 = vadd.f32 %v926, 0.0
      %v959 = vadd.f32 %v927, 0.0
      %v960 = vadd.f32 %v928, 0.0
      %v961 = vadd.f32 %v929, 0.0
      %v962 = vadd.f32 %v930, 0.0
      %v963 = vadd.f32 %v931, 0.0
      %v964 = vadd.f32 %v932, 0.0
      %v965 = vadd.f32 %v933, 0.0
      %v966 = vadd.f32 %v934, 0.0
      %v967 = vadd.f32 %v935, 0.0
      %v968 = vadd.f32 %v936, 0.0
      %v969 = vadd.f32 %v937, 0.0
      %v970 = vadd.f32 %v938, 0.0
      %v971 = vadd.f32 %v939, 0.0
      %v972 = vadd.f32 %v940, 0.0
      %v973 = vadd.f32 %v941, 0.0
      %v974 = vadd.f32 %v942, 0.0
      %v975 = vadd.f32 %v943, 0.0
      %v976 = vadd.f32 %v944, 0.0
      %v977 = vadd.f32 %v945, 0.0
      %v978 = vadd.f32 %v946, 0.0
      %v979 = vadd.f32 %v947, 0.0
      %v980 = vadd.f32 %v948, 0.0
      %v981 = vlaneseq
      %v982 = vshrl.u32 %v981, 7
      %v983 = vsub.s32 0, %v982
      %v984 = vrot.slane %v875, %v983
      %v985 = vmul.f32 %v879, %v984
      %v986 = vmul.f32 %v880, %v984
      %v987 = vmul.f32 %v881, %v984
      %v988 = vmul.f32 %v882, %v984
      %v989 = vmul.f32 %v883, %v984
      %v990 = vmul.f32 %v884, %v984
      %v991 = vmul.f32 %v885, %v984
      %v992 = vmul.f32 %v886, %v984
      %v993 = vmul.f32 %v887, %v984
      %v994 = vmul.f32 %v888, %v984
      %v995 = vmul.f32 %v889, %v984
      %v996 = vmul.f32 %v890, %v984
      %v997 = vmul.f32 %v891, %v984
      %v998 = vmul.f32 %v892, %v984
      %v999 = vmul.f32 %v893, %v984
      %v1000 = vmul.f32 %v894, %v984
      %v1001 = vmul.f32 %v895, %v984
      %v1002 = vmul.f32 %v896, %v984
      %v1003 = vmul.f32 %v897, %v984
      %v1004 = vmul.f32 %v898, %v984
      %v1005 = vmul.f32 %v899, %v984
      %v1006 = vmul.f32 %v900, %v984
      %v1007 = vmul.f32 %v901, %v984
      %v1008 = vmul.f32 %v902, %v984
      %v1009 = vmul.f32 %v903, %v984
      %v1010 = vmul.f32 %v904, %v984
      %v1011 = vmul.f32 %v905, %v984
      %v1012 = vmul.f32 %v906, %v984
      %v1013 = vmul.f32 %v907, %v984
      %v1014 = vmul.f32 %v908, %v984
      %v1015 = vmul.f32 %v909, %v984
      %v1016 = vmul.f32 %v910, %v984
      %v1017 = vadd.f32 %v949, %v985
      %v1018 = vadd.f32 %v950, %v986
      %v1019 = vadd.f32 %v951, %v987
      %v1020 = vadd.f32 %v952, %v988
      %v1021 = vadd.f32 %v953, %v989
      %v1022 = vadd.f32 %v954, %v990
      %v1023 = vadd.f32 %v955, %v991
      %v1024 = vadd.f32 %v956, %v992
      %v1025 = vadd.f32 %v957, %v993
      %v1026 = vadd.f32 %v958, %v994
      %v1027 = vadd.f32 %v959, %v995
      %v1028 = vadd.f32 %v960, %v996
      %v1029 = vadd.f32 %v961, %v997
      %v1030 = vadd.f32 %v962, %v998
      %v1031 = vadd.f32 %v963, %v999
      %v1032 = vadd.f32 %v964, %v1000
      %v1033 = vadd.f32 %v965, %v1001
      %v1034 = vadd.f32 %v966, %v1002
      %v1035 = vadd.f32 %v967, %v1003
      %v1036 = vadd.f32 %v968, %v1004
      %v1037 = vadd.f32 %v969, %v1005
      %v1038 = vadd.f32 %v970, %v1006
      %v1039 = vadd.f32 %v971, %v1007
      %v1040 = vadd.f32 %v972, %v1008
      %v1041 = vadd.f32 %v973, %v1009
      %v1042 = vadd.f32 %v974, %v1010
      %v1043 = vadd.f32 %v975, %v1011
      %v1044 = vadd.f32 %v976, %v1012
      %v1045 = vadd.f32 %v977, %v1013
      %v1046 = vadd.f32 %v978, %v1014
      %v1047 = vadd.f32 %v979, %v1015
      %v1048 = vadd.f32 %v980, %v1016
      %v1049 = vlaneseq
      %v1050 = vshrl.u32 %v1049, 7
      %v1051 = vsub.s32 0, %v1050
      %v1052 = vrot.slane %v876, %v1051
      %v1053 = vmul.f32 %v881, %v1052
      %v1054 = vmul.f32 %v882, %v1052
      %v1055 = vmul.f32 %v883, %v1052
      %v1056 = vmul.f32 %v884, %v1052
      %v1057 = vmul.f32 %v885, %v1052
      %v1058 = vmul.f32 %v886, %v1052
      %v1059 = vmul.f32 %v887, %v1052
      %v1060 = vmul.f32 %v888, %v1052
      %v1061 = vmul.f32 %v889, %v1052
      %v1062 = vmul.f32 %v890, %v1052
      %v1063 = vmul.f32 %v891, %v1052
      %v1064 = vmul.f32 %v892, %v1052
      %v1065 = vmul.f32 %v893, %v1052
      %v1066 = vmul.f32 %v894, %v1052
      %v1067 = vmul.f32 %v895, %v1052
      %v1068 = vmul.f32 %v896, %v1052
      %v1069 = vmul.f32 %v897, %v1052
      %v1070 = vmul.f32 %v898, %v1052
      %v1071 = vmul.f32 %v899, %v1052
      %v1072 = vmul.f32 %v900, %v1052
      %v1073 = vmul.f32 %v901, %v1052
      %v1074 = vmul.f32 %v902, %v1052
      %v1075 = vmul.f32 %v903, %v1052
      %v1076 = vmul.f32 %v904, %v1052
      %v1077 = vmul.f32 %v905, %v1052
      %v1078 = vmul.f32 %v906, %v1052
      %v1079 = vmul.f32 %v907, %v1052
      %v1080 = vmul.f32 %v908, %v1052
      %v1081 = vmul.f32 %v909, %v1052
      %v1082 = vmul.f32 %v910, %v1052
      %v1083 = vmul.f32 %v911, %v1052
      %v1084 = vmul.f32 %v912, %v1052
      %v1085 = vadd.f32 %v1017, %v1053
      %v1086 = vadd.f32 %v1018, %v1054
      %v1087 = vadd.f32 %v1019, %v1055
      %v1088 = vadd.f32 %v1020, %v1056
      %v1089 = vadd.f32 %v1021, %v1057
      %v1090 = vadd.f32 %v1022, %v1058
      %v1091 = vadd.f32 %v1023, %v1059
      %v1092 = vadd.f32 %v1024, %v1060
      %v1093 = vadd.f32 %v1025, %v1061
      %v1094 = vadd.f32 %v1026, %v1062
      %v1095 = vadd.f32 %v1027, %v1063
      %v1096 = vadd.f32 %v1028, %v1064
      %v1097 = vadd.f32 %v1029, %v1065
      %v1098 = vadd.f32 %v1030, %v1066
      %v1099 = vadd.f32 %v1031, %v1067
      %v1100 = vadd.f32 %v1032, %v1068
      %v1101 = vadd.f32 %v1033, %v1069
      %v1102 = vadd.f32 %v1034, %v1070
      %v1103 = vadd.f32 %v1035, %v1071
      %v1104 = vadd.f32 %v1036, %v1072
      %v1105 = vadd.f32 %v1037, %v1073
      %v1106 = vadd.f32 %v1038, %v1074
      %v1107 = vadd.f32 %v1039, %v1075
      %v1108 = vadd.f32 %v1040, %v1076
      %v1109 = vadd.f32 %v1041, %v1077
      %v1110 = vadd.f32 %v1042, %v1078
      %v1111 = vadd.f32 %v1043, %v1079
      %v1112 = vadd.f32 %v1044, %v1080
      %v1113 = vadd.f32 %v1045, %v1081
      %v1114 = vadd.f32 %v1046, %v1082
      %v1115 = vadd.f32 %v1047, %v1083
      %v1116 = vadd.f32 %v1048, %v1084
      %v1117 = vld [vmem:[#allocation2 + $0x8] sm:$0xff]
      %v1118 = vld [vmem:[#allocation2 + $0x10] sm:$0xff]
      %v1119 = vld [vmem:[#allocation2 + $0x28] sm:$0xff]
      %v1120 = vld [vmem:[#allocation2 + $0x30] sm:$0xff]
      %v1121 = vld [vmem:[#allocation2 + $0x48] sm:$0xff]
      %v1122 = vld [vmem:[#allocation2 + $0x50] sm:$0xff]
      %v1123 = vld [vmem:[#allocation2 + $0x68] sm:$0xff]
      %v1124 = vld [vmem:[#allocation2 + $0x70] sm:$0xff]
      %v1125 = vld [vmem:[#allocation2 + $0x88] sm:$0xff]
      %v1126 = vld [vmem:[#allocation2 + $0x90] sm:$0xff]
      %v1127 = vld [vmem:[#allocation2 + $0xa8] sm:$0xff]
      %v1128 = vld [vmem:[#allocation2 + $0xb0] sm:$0xff]
      %v1129 = vld [vmem:[#allocation2 + $0xc8] sm:$0xff]
      %v1130 = vld [vmem:[#allocation2 + $0xd0] sm:$0xff]
      %v1131 = vld [vmem:[#allocation2 + $0xe8] sm:$0xff]
      %v1132 = vld [vmem:[#allocation2 + $0xf0] sm:$0xff]
      %v1133 = vld [vmem:[#allocation2 + $0x108] sm:$0xff]
      %v1134 = vld [vmem:[#allocation2 + $0x110] sm:$0xff]
      %v1135 = vld [vmem:[#allocation2 + $0x128] sm:$0xff]
      %v1136 = vld [vmem:[#allocation2 + $0x130] sm:$0xff]
      %v1137 = vld [vmem:[#allocation2 + $0x148] sm:$0xff]
      %v1138 = vld [vmem:[#allocation2 + $0x150] sm:$0xff]
      %v1139 = vld [vmem:[#allocation2 + $0x168] sm:$0xff]
      %v1140 = vld [vmem:[#allocation2 + $0x170] sm:$0xff]
      %v1141 = vld [vmem:[#allocation2 + $0x188] sm:$0xff]
      %v1142 = vld [vmem:[#allocation2 + $0x190] sm:$0xff]
      %v1143 = vld [vmem:[#allocation2 + $0x1a8] sm:$0xff]
      %v1144 = vld [vmem:[#allocation2 + $0x1b0] sm:$0xff]
      %v1145 = vld [vmem:[#allocation2 + $0x1c8] sm:$0xff]
      %v1146 = vld [vmem:[#allocation2 + $0x1d0] sm:$0xff]
      %v1147 = vld [vmem:[#allocation2 + $0x1e8] sm:$0xff]
      %v1148 = vld [vmem:[#allocation2 + $0x1f0] sm:$0xff]
      %v1149 = vld [vmem:[#allocation2 + $0x208] sm:$0xff]
      %v1150 = vld [vmem:[#allocation2 + $0x210] sm:$0xff]
      %v1151 = vld [vmem:[#allocation2 + $0x228] sm:$0xff]
      %v1152 = vld [vmem:[#allocation2 + $0x230] sm:$0xff]
      %v1153 = vlaneseq
      %v1154 = vshrl.u32 %v1153, 7
      %v1155 = vsub.s32 1, %v1154
      %v1156 = vrot.slane %v874, %v1155
      %v1157 = vmul.f32 %v1117, %v1156
      %v1158 = vmul.f32 %v1118, %v1156
      %v1159 = vmul.f32 %v1119, %v1156
      %v1160 = vmul.f32 %v1120, %v1156
      %v1161 = vmul.f32 %v1121, %v1156
      %v1162 = vmul.f32 %v1122, %v1156
      %v1163 = vmul.f32 %v1123, %v1156
      %v1164 = vmul.f32 %v1124, %v1156
      %v1165 = vmul.f32 %v1125, %v1156
      %v1166 = vmul.f32 %v1126, %v1156
      %v1167 = vmul.f32 %v1127, %v1156
      %v1168 = vmul.f32 %v1128, %v1156
      %v1169 = vmul.f32 %v1129, %v1156
      %v1170 = vmul.f32 %v1130, %v1156
      %v1171 = vmul.f32 %v1131, %v1156
      %v1172 = vmul.f32 %v1132, %v1156
      %v1173 = vmul.f32 %v1133, %v1156
      %v1174 = vmul.f32 %v1134, %v1156
      %v1175 = vmul.f32 %v1135, %v1156
      %v1176 = vmul.f32 %v1136, %v1156
      %v1177 = vmul.f32 %v1137, %v1156
      %v1178 = vmul.f32 %v1138, %v1156
      %v1179 = vmul.f32 %v1139, %v1156
      %v1180 = vmul.f32 %v1140, %v1156
      %v1181 = vmul.f32 %v1141, %v1156
      %v1182 = vmul.f32 %v1142, %v1156
      %v1183 = vmul.f32 %v1143, %v1156
      %v1184 = vmul.f32 %v1144, %v1156
      %v1185 = vmul.f32 %v1145, %v1156
      %v1186 = vmul.f32 %v1146, %v1156
      %v1187 = vmul.f32 %v1147, %v1156
      %v1188 = vmul.f32 %v1148, %v1156
      %v1189 = vadd.f32 %v1085, %v1157
      %v1190 = vadd.f32 %v1086, %v1158
      %v1191 = vadd.f32 %v1087, %v1159
      %v1192 = vadd.f32 %v1088, %v1160
      %v1193 = vadd.f32 %v1089, %v1161
      %v1194 = vadd.f32 %v1090, %v1162
      %v1195 = vadd.f32 %v1091, %v1163
      %v1196 = vadd.f32 %v1092, %v1164
      %v1197 = vadd.f32 %v1093, %v1165
      %v1198 = vadd.f32 %v1094, %v1166
      %v1199 = vadd.f32 %v1095, %v1167
      %v1200 = vadd.f32 %v1096, %v1168
      %v1201 = vadd.f32 %v1097, %v1169
      %v1202 = vadd.f32 %v1098, %v1170
      %v1203 = vadd.f32 %v1099, %v1171
      %v1204 = vadd.f32 %v1100, %v1172
      %v1205 = vadd.f32 %v1101, %v1173
      %v1206 = vadd.f32 %v1102, %v1174
      %v1207 = vadd.f32 %v1103, %v1175
      %v1208 = vadd.f32 %v1104, %v1176
      %v1209 = vadd.f32 %v1105, %v1177
      %v1210 = vadd.f32 %v1106, %v1178
      %v1211 = vadd.f32 %v1107, %v1179
      %v1212 = vadd.f32 %v1108, %v1180
      %v1213 = vadd.f32 %v1109, %v1181
      %v1214 = vadd.f32 %v1110, %v1182
      %v1215 = vadd.f32 %v1111, %v1183
      %v1216 = vadd.f32 %v1112, %v1184
      %v1217 = vadd.f32 %v1113, %v1185
      %v1218 = vadd.f32 %v1114, %v1186
      %v1219 = vadd.f32 %v1115, %v1187
      %v1220 = vadd.f32 %v1116, %v1188
      %v1221 = vlaneseq
      %v1222 = vshrl.u32 %v1221, 7
      %v1223 = vsub.s32 1, %v1222
      %v1224 = vrot.slane %v875, %v1223
      %v1225 = vmul.f32 %v1119, %v1224
      %v1226 = vmul.f32 %v1120, %v1224
      %v1227 = vmul.f32 %v1121, %v1224
      %v1228 = vmul.f32 %v1122, %v1224
      %v1229 = vmul.f32 %v1123, %v1224
      %v1230 = vmul.f32 %v1124, %v1224
      %v1231 = vmul.f32 %v1125, %v1224
      %v1232 = vmul.f32 %v1126, %v1224
      %v1233 = vmul.f32 %v1127, %v1224
      %v1234 = vmul.f32 %v1128, %v1224
      %v1235 = vmul.f32 %v1129, %v1224
      %v1236 = vmul.f32 %v1130, %v1224
      %v1237 = vmul.f32 %v1131, %v1224
      %v1238 = vmul.f32 %v1132, %v1224
      %v1239 = vmul.f32 %v1133, %v1224
      %v1240 = vmul.f32 %v1134, %v1224
      %v1241 = vmul.f32 %v1135, %v1224
      %v1242 = vmul.f32 %v1136, %v1224
      %v1243 = vmul.f32 %v1137, %v1224
      %v1244 = vmul.f32 %v1138, %v1224
      %v1245 = vmul.f32 %v1139, %v1224
      %v1246 = vmul.f32 %v1140, %v1224
      %v1247 = vmul.f32 %v1141, %v1224
      %v1248 = vmul.f32 %v1142, %v1224
      %v1249 = vmul.f32 %v1143, %v1224
      %v1250 = vmul.f32 %v1144, %v1224
      %v1251 = vmul.f32 %v1145, %v1224
      %v1252 = vmul.f32 %v1146, %v1224
      %v1253 = vmul.f32 %v1147, %v1224
      %v1254 = vmul.f32 %v1148, %v1224
      %v1255 = vmul.f32 %v1149, %v1224
      %v1256 = vmul.f32 %v1150, %v1224
      %v1257 = vadd.f32 %v1189, %v1225
      %v1258 = vadd.f32 %v1190, %v1226
      %v1259 = vadd.f32 %v1191, %v1227
      %v1260 = vadd.f32 %v1192, %v1228
      %v1261 = vadd.f32 %v1193, %v1229
      %v1262 = vadd.f32 %v1194, %v1230
      %v1263 = vadd.f32 %v1195, %v1231
      %v1264 = vadd.f32 %v1196, %v1232
      %v1265 = vadd.f32 %v1197, %v1233
      %v1266 = vadd.f32 %v1198, %v1234
      %v1267 = vadd.f32 %v1199, %v1235
      %v1268 = vadd.f32 %v1200, %v1236
      %v1269 = vadd.f32 %v1201, %v1237
      %v1270 = vadd.f32 %v1202, %v1238
      %v1271 = vadd.f32 %v1203, %v1239
      %v1272 = vadd.f32 %v1204, %v1240
      %v1273 = vadd.f32 %v1205, %v1241
      %v1274 = vadd.f32 %v1206, %v1242
      %v1275 = vadd.f32 %v1207, %v1243
      %v1276 = vadd.f32 %v1208, %v1244
      %v1277 = vadd.f32 %v1209, %v1245
      %v1278 = vadd.f32 %v1210, %v1246
      %v1279 = vadd.f32 %v1211, %v1247
      %v1280 = vadd.f32 %v1212, %v1248
      %v1281 = vadd.f32 %v1213, %v1249
      %v1282 = vadd.f32 %v1214, %v1250
      %v1283 = vadd.f32 %v1215, %v1251
      %v1284 = vadd.f32 %v1216, %v1252
      %v1285 = vadd.f32 %v1217, %v1253
      %v1286 = vadd.f32 %v1218, %v1254
      %v1287 = vadd.f32 %v1219, %v1255
      %v1288 = vadd.f32 %v1220, %v1256
      %v1289 = vlaneseq
      %v1290 = vshrl.u32 %v1289, 7
      %v1291 = vsub.s32 1, %v1290
      %v1292 = vrot.slane %v876, %v1291
      %v1293 = vmul.f32 %v1121, %v1292
      %v1294 = vmul.f32 %v1122, %v1292
      %v1295 = vmul.f32 %v1123, %v1292
      %v1296 = vmul.f32 %v1124, %v1292
      %v1297 = vmul.f32 %v1125, %v1292
      %v1298 = vmul.f32 %v1126, %v1292
      %v1299 = vmul.f32 %v1127, %v1292
      %v1300 = vmul.f32 %v1128, %v1292
      %v1301 = vmul.f32 %v1129, %v1292
      %v1302 = vmul.f32 %v1130, %v1292
      %v1303 = vmul.f32 %v1131, %v1292
      %v1304 = vmul.f32 %v1132, %v1292
      %v1305 = vmul.f32 %v1133, %v1292
      %v1306 = vmul.f32 %v1134, %v1292
      %v1307 = vmul.f32 %v1135, %v1292
      %v1308 = vmul.f32 %v1136, %v1292
      %v1309 = vmul.f32 %v1137, %v1292
      %v1310 = vmul.f32 %v1138, %v1292
      %v1311 = vmul.f32 %v1139, %v1292
      %v1312 = vmul.f32 %v1140, %v1292
      %v1313 = vmul.f32 %v1141, %v1292
      %v1314 = vmul.f32 %v1142, %v1292
      %v1315 = vmul.f32 %v1143, %v1292
      %v1316 = vmul.f32 %v1144, %v1292
      %v1317 = vmul.f32 %v1145, %v1292
      %v1318 = vmul.f32 %v1146, %v1292
      %v1319 = vmul.f32 %v1147, %v1292
      %v1320 = vmul.f32 %v1148, %v1292
      %v1321 = vmul.f32 %v1149, %v1292
      %v1322 = vmul.f32 %v1150, %v1292
      %v1323 = vmul.f32 %v1151, %v1292
      %v1324 = vmul.f32 %v1152, %v1292
      %v1325 = vadd.f32 %v1257, %v1293
      %v1326 = vadd.f32 %v1258, %v1294
      %v1327 = vadd.f32 %v1259, %v1295
      %v1328 = vadd.f32 %v1260, %v1296
      %v1329 = vadd.f32 %v1261, %v1297
      %v1330 = vadd.f32 %v1262, %v1298
      %v1331 = vadd.f32 %v1263, %v1299
      %v1332 = vadd.f32 %v1264, %v1300
      %v1333 = vadd.f32 %v1265, %v1301
      %v1334 = vadd.f32 %v1266, %v1302
      %v1335 = vadd.f32 %v1267, %v1303
      %v1336 = vadd.f32 %v1268, %v1304
      %v1337 = vadd.f32 %v1269, %v1305
      %v1338 = vadd.f32 %v1270, %v1306
      %v1339 = vadd.f32 %v1271, %v1307
      %v1340 = vadd.f32 %v1272, %v1308
      %v1341 = vadd.f32 %v1273, %v1309
      %v1342 = vadd.f32 %v1274, %v1310
      %v1343 = vadd.f32 %v1275, %v1311
      %v1344 = vadd.f32 %v1276, %v1312
      %v1345 = vadd.f32 %v1277, %v1313
      %v1346 = vadd.f32 %v1278, %v1314
      %v1347 = vadd.f32 %v1279, %v1315
      %v1348 = vadd.f32 %v1280, %v1316
      %v1349 = vadd.f32 %v1281, %v1317
      %v1350 = vadd.f32 %v1282, %v1318
      %v1351 = vadd.f32 %v1283, %v1319
      %v1352 = vadd.f32 %v1284, %v1320
      %v1353 = vadd.f32 %v1285, %v1321
      %v1354 = vadd.f32 %v1286, %v1322
      %v1355 = vadd.f32 %v1287, %v1323
      %v1356 = vadd.f32 %v1288, %v1324
      %v1357 = vld [vmem:[#allocation2 + $0x9] sm:$0xff]
      %v1358 = vld [vmem:[#allocation2 + $0x11] sm:$0xff]
      %v1359 = vld [vmem:[#allocation2 + $0x29] sm:$0xff]
      %v1360 = vld [vmem:[#allocation2 + $0x31] sm:$0xff]
      %v1361 = vld [vmem:[#allocation2 + $0x49] sm:$0xff]
      %v1362 = vld [vmem:[#allocation2 + $0x51] sm:$0xff]
      %v1363 = vld [vmem:[#allocation2 + $0x69] sm:$0xff]
      %v1364 = vld [vmem:[#allocation2 + $0x71] sm:$0xff]
      %v1365 = vld [vmem:[#allocation2 + $0x89] sm:$0xff]
      %v1366 = vld [vmem:[#allocation2 + $0x91] sm:$0xff]
      %v1367 = vld [vmem:[#allocation2 + $0xa9] sm:$0xff]
      %v1368 = vld [vmem:[#allocation2 + $0xb1] sm:$0xff]
      %v1369 = vld [vmem:[#allocation2 + $0xc9] sm:$0xff]
      %v1370 = vld [vmem:[#allocation2 + $0xd1] sm:$0xff]
      %v1371 = vld [vmem:[#allocation2 + $0xe9] sm:$0xff]
      %v1372 = vld [vmem:[#allocation2 + $0xf1] sm:$0xff]
      %v1373 = vld [vmem:[#allocation2 + $0x109] sm:$0xff]
      %v1374 = vld [vmem:[#allocation2 + $0x111] sm:$0xff]
      %v1375 = vld [vmem:[#allocation2 + $0x129] sm:$0xff]
      %v1376 = vld [vmem:[#allocation2 + $0x131] sm:$0xff]
      %v1377 = vld [vmem:[#allocation2 + $0x149] sm:$0xff]
      %v1378 = vld [vmem:[#allocation2 + $0x151] sm:$0xff]
      %v1379 = vld [vmem:[#allocation2 + $0x169] sm:$0xff]
      %v1380 = vld [vmem:[#allocation2 + $0x171] sm:$0xff]
      %v1381 = vld [vmem:[#allocation2 + $0x189] sm:$0xff]
      %v1382 = vld [vmem:[#allocation2 + $0x191] sm:$0xff]
      %v1383 = vld [vmem:[#allocation2 + $0x1a9] sm:$0xff]
      %v1384 = vld [vmem:[#allocation2 + $0x1b1] sm:$0xff]
      %v1385 = vld [vmem:[#allocation2 + $0x1c9] sm:$0xff]
      %v1386 = vld [vmem:[#allocation2 + $0x1d1] sm:$0xff]
      %v1387 = vld [vmem:[#allocation2 + $0x1e9] sm:$0xff]
      %v1388 = vld [vmem:[#allocation2 + $0x1f1] sm:$0xff]
      %v1389 = vld [vmem:[#allocation2 + $0x209] sm:$0xff]
      %v1390 = vld [vmem:[#allocation2 + $0x211] sm:$0xff]
      %v1391 = vld [vmem:[#allocation2 + $0x229] sm:$0xff]
      %v1392 = vld [vmem:[#allocation2 + $0x231] sm:$0xff]
      %v1393 = vlaneseq
      %v1394 = vshrl.u32 %v1393, 7
      %v1395 = vsub.s32 2, %v1394
      %v1396 = vrot.slane %v874, %v1395
      %v1397 = vmul.f32 %v1357, %v1396
      %v1398 = vmul.f32 %v1358, %v1396
      %v1399 = vmul.f32 %v1359, %v1396
      %v1400 = vmul.f32 %v1360, %v1396
      %v1401 = vmul.f32 %v1361, %v1396
      %v1402 = vmul.f32 %v1362, %v1396
      %v1403 = vmul.f32 %v1363, %v1396
      %v1404 = vmul.f32 %v1364, %v1396
      %v1405 = vmul.f32 %v1365, %v1396
      %v1406 = vmul.f32 %v1366, %v1396
      %v1407 = vmul.f32 %v1367, %v1396
      %v1408 = vmul.f32 %v1368, %v1396
      %v1409 = vmul.f32 %v1369, %v1396
      %v1410 = vmul.f32 %v1370, %v1396
      %v1411 = vmul.f32 %v1371, %v1396
      %v1412 = vmul.f32 %v1372, %v1396
      %v1413 = vmul.f32 %v1373, %v1396
      %v1414 = vmul.f32 %v1374, %v1396
      %v1415 = vmul.f32 %v1375, %v1396
      %v1416 = vmul.f32 %v1376, %v1396
      %v1417 = vmul.f32 %v1377, %v1396
      %v1418 = vmul.f32 %v1378, %v1396
      %v1419 = vmul.f32 %v1379, %v1396
      %v1420 = vmul.f32 %v1380, %v1396
      %v1421 = vmul.f32 %v1381, %v1396
      %v1422 = vmul.f32 %v1382, %v1396
      %v1423 = vmul.f32 %v1383, %v1396
      %v1424 = vmul.f32 %v1384, %v1396
      %v1425 = vmul.f32 %v1385, %v1396
      %v1426 = vmul.f32 %v1386, %v1396
      %v1427 = vmul.f32 %v1387, %v1396
      %v1428 = vmul.f32 %v1388, %v1396
      %v1429 = vadd.f32 %v1325, %v1397
      %v1430 = vadd.f32 %v1326, %v1398
      %v1431 = vadd.f32 %v1327, %v1399
      %v1432 = vadd.f32 %v1328, %v1400
      %v1433 = vadd.f32 %v1329, %v1401
      %v1434 = vadd.f32 %v1330, %v1402
      %v1435 = vadd.f32 %v1331, %v1403
      %v1436 = vadd.f32 %v1332, %v1404
      %v1437 = vadd.f32 %v1333, %v1405
      %v1438 = vadd.f32 %v1334, %v1406
      %v1439 = vadd.f32 %v1335, %v1407
      %v1440 = vadd.f32 %v1336, %v1408
      %v1441 = vadd.f32 %v1337, %v1409
      %v1442 = vadd.f32 %v1338, %v1410
      %v1443 = vadd.f32 %v1339, %v1411
      %v1444 = vadd.f32 %v1340, %v1412
      %v1445 = vadd.f32 %v1341, %v1413
      %v1446 = vadd.f32 %v1342, %v1414
      %v1447 = vadd.f32 %v1343, %v1415
      %v1448 = vadd.f32 %v1344, %v1416
      %v1449 = vadd.f32 %v1345, %v1417
      %v1450 = vadd.f32 %v1346, %v1418
      %v1451 = vadd.f32 %v1347, %v1419
      %v1452 = vadd.f32 %v1348, %v1420
      %v1453 = vadd.f32 %v1349, %v1421
      %v1454 = vadd.f32 %v1350, %v1422
      %v1455 = vadd.f32 %v1351, %v1423
      %v1456 = vadd.f32 %v1352, %v1424
      %v1457 = vadd.f32 %v1353, %v1425
      %v1458 = vadd.f32 %v1354, %v1426
      %v1459 = vadd.f32 %v1355, %v1427
      %v1460 = vadd.f32 %v1356, %v1428
      %v1461 = vlaneseq
      %v1462 = vshrl.u32 %v1461, 7
      %v1463 = vsub.s32 2, %v1462
      %v1464 = vrot.slane %v875, %v1463
      %v1465 = vmul.f32 %v1359, %v1464
      %v1466 = vmul.f32 %v1360, %v1464
      %v1467 = vmul.f32 %v1361, %v1464
      %v1468 = vmul.f32 %v1362, %v1464
      %v1469 = vmul.f32 %v1363, %v1464
      %v1470 = vmul.f32 %v1364, %v1464
      %v1471 = vmul.f32 %v1365, %v1464
      %v1472 = vmul.f32 %v1366, %v1464
      %v1473 = vmul.f32 %v1367, %v1464
      %v1474 = vmul.f32 %v1368, %v1464
      %v1475 = vmul.f32 %v1369, %v1464
      %v1476 = vmul.f32 %v1370, %v1464
      %v1477 = vmul.f32 %v1371, %v1464
      %v1478 = vmul.f32 %v1372, %v1464
      %v1479 = vmul.f32 %v1373, %v1464
      %v1480 = vmul.f32 %v1374, %v1464
      %v1481 = vmul.f32 %v1375, %v1464
      %v1482 = vmul.f32 %v1376, %v1464
      %v1483 = vmul.f32 %v1377, %v1464
      %v1484 = vmul.f32 %v1378, %v1464
      %v1485 = vmul.f32 %v1379, %v1464
      %v1486 = vmul.f32 %v1380, %v1464
      %v1487 = vmul.f32 %v1381, %v1464
      %v1488 = vmul.f32 %v1382, %v1464
      %v1489 = vmul.f32 %v1383, %v1464
      %v1490 = vmul.f32 %v1384, %v1464
      %v1491 = vmul.f32 %v1385, %v1464
      %v1492 = vmul.f32 %v1386, %v1464
      %v1493 = vmul.f32 %v1387, %v1464
      %v1494 = vmul.f32 %v1388, %v1464
      %v1495 = vmul.f32 %v1389, %v1464
      %v1496 = vmul.f32 %v1390, %v1464
      %v1497 = vadd.f32 %v1429, %v1465
      %v1498 = vadd.f32 %v1430, %v1466
      %v1499 = vadd.f32 %v1431, %v1467
      %v1500 = vadd.f32 %v1432, %v1468
      %v1501 = vadd.f32 %v1433, %v1469
      %v1502 = vadd.f32 %v1434, %v1470
      %v1503 = vadd.f32 %v1435, %v1471
      %v1504 = vadd.f32 %v1436, %v1472
      %v1505 = vadd.f32 %v1437, %v1473
      %v1506 = vadd.f32 %v1438, %v1474
      %v1507 = vadd.f32 %v1439, %v1475
      %v1508 = vadd.f32 %v1440, %v1476
      %v1509 = vadd.f32 %v1441, %v1477
      %v1510 = vadd.f32 %v1442, %v1478
      %v1511 = vadd.f32 %v1443, %v1479
      %v1512 = vadd.f32 %v1444, %v1480
      %v1513 = vadd.f32 %v1445, %v1481
      %v1514 = vadd.f32 %v1446, %v1482
      %v1515 = vadd.f32 %v1447, %v1483
      %v1516 = vadd.f32 %v1448, %v1484
      %v1517 = vadd.f32 %v1449, %v1485
      %v1518 = vadd.f32 %v1450, %v1486
      %v1519 = vadd.f32 %v1451, %v1487
      %v1520 = vadd.f32 %v1452, %v1488
      %v1521 = vadd.f32 %v1453, %v1489
      %v1522 = vadd.f32 %v1454, %v1490
      %v1523 = vadd.f32 %v1455, %v1491
      %v1524 = vadd.f32 %v1456, %v1492
      %v1525 = vadd.f32 %v1457, %v1493
      %v1526 = vadd.f32 %v1458, %v1494
      %v1527 = vadd.f32 %v1459, %v1495
      %v1528 = vadd.f32 %v1460, %v1496
      %v1529 = vlaneseq
      %v1530 = vshrl.u32 %v1529, 7
      %v1531 = vsub.s32 2, %v1530
      %v1532 = vrot.slane %v876, %v1531
      %v1533 = vmul.f32 %v1361, %v1532
      %v1534 = vmul.f32 %v1362, %v1532
      %v1535 = vmul.f32 %v1363, %v1532
      %v1536 = vmul.f32 %v1364, %v1532
      %v1537 = vmul.f32 %v1365, %v1532
      %v1538 = vmul.f32 %v1366, %v1532
      %v1539 = vmul.f32 %v1367, %v1532
      %v1540 = vmul.f32 %v1368, %v1532
      %v1541 = vmul.f32 %v1369, %v1532
      %v1542 = vmul.f32 %v1370, %v1532
      %v1543 = vmul.f32 %v1371, %v1532
      %v1544 = vmul.f32 %v1372, %v1532
      %v1545 = vmul.f32 %v1373, %v1532
      %v1546 = vmul.f32 %v1374, %v1532
      %v1547 = vmul.f32 %v1375, %v1532
      %v1548 = vmul.f32 %v1376, %v1532
      %v1549 = vmul.f32 %v1377, %v1532
      %v1550 = vmul.f32 %v1378, %v1532
      %v1551 = vmul.f32 %v1379, %v1532
      %v1552 = vmul.f32 %v1380, %v1532
      %v1553 = vmul.f32 %v1381, %v1532
      %v1554 = vmul.f32 %v1382, %v1532
      %v1555 = vmul.f32 %v1383, %v1532
      %v1556 = vmul.f32 %v1384, %v1532
      %v1557 = vmul.f32 %v1385, %v1532
      %v1558 = vmul.f32 %v1386, %v1532
      %v1559 = vmul.f32 %v1387, %v1532
      %v1560 = vmul.f32 %v1388, %v1532
      %v1561 = vmul.f32 %v1389, %v1532
      %v1562 = vmul.f32 %v1390, %v1532
      %v1563 = vmul.f32 %v1391, %v1532
      %v1564 = vmul.f32 %v1392, %v1532
      %v1565 = vadd.f32 %v1497, %v1533
      %v1566 = vadd.f32 %v1498, %v1534
      %v1567 = vadd.f32 %v1499, %v1535
      %v1568 = vadd.f32 %v1500, %v1536
      %v1569 = vadd.f32 %v1501, %v1537
      %v1570 = vadd.f32 %v1502, %v1538
      %v1571 = vadd.f32 %v1503, %v1539
      %v1572 = vadd.f32 %v1504, %v1540
      %v1573 = vadd.f32 %v1505, %v1541
      %v1574 = vadd.f32 %v1506, %v1542
      %v1575 = vadd.f32 %v1507, %v1543
      %v1576 = vadd.f32 %v1508, %v1544
      %v1577 = vadd.f32 %v1509, %v1545
      %v1578 = vadd.f32 %v1510, %v1546
      %v1579 = vadd.f32 %v1511, %v1547
      %v1580 = vadd.f32 %v1512, %v1548
      %v1581 = vadd.f32 %v1513, %v1549
      %v1582 = vadd.f32 %v1514, %v1550
      %v1583 = vadd.f32 %v1515, %v1551
      %v1584 = vadd.f32 %v1516, %v1552
      %v1585 = vadd.f32 %v1517, %v1553
      %v1586 = vadd.f32 %v1518, %v1554
      %v1587 = vadd.f32 %v1519, %v1555
      %v1588 = vadd.f32 %v1520, %v1556
      %v1589 = vadd.f32 %v1521, %v1557
      %v1590 = vadd.f32 %v1522, %v1558
      %v1591 = vadd.f32 %v1523, %v1559
      %v1592 = vadd.f32 %v1524, %v1560
      %v1593 = vadd.f32 %v1525, %v1561
      %v1594 = vadd.f32 %v1526, %v1562
      %v1595 = vadd.f32 %v1527, %v1563
      %v1596 = vadd.f32 %v1528, %v1564
      %v1597 = vld [vmem:[%s4] sm:$0x1]
      %v1599 = vlaneseq
      %v1600 = vshrl.u32 %v1599, 7
      %v1601 = vsub.s32 0, %v1600
      %v1602 = vrot.slane %v1597, %v1601
      %v1604 = vadd.f32 %v1565, %v1602
      %v1605 = vadd.f32 %v1566, %v1602
      %v1606 = vadd.f32 %v1567, %v1602
      %v1607 = vadd.f32 %v1568, %v1602
      %v1608 = vadd.f32 %v1569, %v1602
      %v1609 = vadd.f32 %v1570, %v1602
      %v1610 = vadd.f32 %v1571, %v1602
      %v1611 = vadd.f32 %v1572, %v1602
      %v1612 = vadd.f32 %v1573, %v1602
      %v1613 = vadd.f32 %v1574, %v1602
      %v1614 = vadd.f32 %v1575, %v1602
      %v1615 = vadd.f32 %v1576, %v1602
      %v1616 = vadd.f32 %v1577, %v1602
      %v1617 = vadd.f32 %v1578, %v1602
      %v1618 = vadd.f32 %v1579, %v1602
      %v1619 = vadd.f32 %v1580, %v1602
      %v1620 = vadd.f32 %v1581, %v1602
      %v1621 = vadd.f32 %v1582, %v1602
      %v1622 = vadd.f32 %v1583, %v1602
      %v1623 = vadd.f32 %v1584, %v1602
      %v1624 = vadd.f32 %v1585, %v1602
      %v1625 = vadd.f32 %v1586, %v1602
      %v1626 = vadd.f32 %v1587, %v1602
      %v1627 = vadd.f32 %v1588, %v1602
      %v1628 = vadd.f32 %v1589, %v1602
      %v1629 = vadd.f32 %v1590, %v1602
      %v1630 = vadd.f32 %v1591, %v1602
      %v1631 = vadd.f32 %v1592, %v1602
      %v1632 = vadd.f32 %v1593, %v1602
      %v1633 = vadd.f32 %v1594, %v1602
      %v1634 = vadd.f32 %v1595, %v1602
      %v1635 = vadd.f32 %v1596, %v1602
      %v1636 = vmax.f32 %v1604, 0.0
      %v1637 = vmax.f32 %v1605, 0.0
      %v1638 = vmax.f32 %v1606, 0.0
      %v1639 = vmax.f32 %v1607, 0.0
      %v1640 = vmax.f32 %v1608, 0.0
      %v1641 = vmax.f32 %v1609, 0.0
      %v1642 = vmax.f32 %v1610, 0.0
      %v1643 = vmax.f32 %v1611, 0.0
      %v1644 = vmax.f32 %v1612, 0.0
      %v1645 = vmax.f32 %v1613, 0.0
      %v1646 = vmax.f32 %v1614, 0.0
      %v1647 = vmax.f32 %v1615, 0.0
      %v1648 = vmax.f32 %v1616, 0.0
      %v1649 = vmax.f32 %v1617, 0.0
      %v1650 = vmax.f32 %v1618, 0.0
      %v1651 = vmax.f32 %v1619, 0.0
      %v1652 = vmax.f32 %v1620, 0.0
      %v1653 = vmax.f32 %v1621, 0.0
      %v1654 = vmax.f32 %v1622, 0.0
      %v1655 = vmax.f32 %v1623, 0.0
      %v1656 = vmax.f32 %v1624, 0.0
      %v1657 = vmax.f32 %v1625, 0.0
      %v1658 = vmax.f32 %v1626, 0.0
      %v1659 = vmax.f32 %v1627, 0.0
      %v1660 = vmax.f32 %v1628, 0.0
      %v1661 = vmax.f32 %v1629, 0.0
      %v1662 = vmax.f32 %v1630, 0.0
      %v1663 = vmax.f32 %v1631, 0.0
      %v1664 = vmax.f32 %v1632, 0.0
      %v1665 = vmax.f32 %v1633, 0.0
      %v1666 = vmax.f32 %v1634, 0.0
      %v1667 = vmax.f32 %v1635, 0.0
      %v1668 = vmin.f32 %v1636, 6.0
      %v1669 = vmin.f32 %v1637, 6.0
      %v1670 = vmin.f32 %v1638, 6.0
      %v1671 = vmin.f32 %v1639, 6.0
      %v1672 = vmin.f32 %v1640, 6.0
      %v1673 = vmin.f32 %v1641, 6.0
      %v1674 = vmin.f32 %v1642, 6.0
      %v1675 = vmin.f32 %v1643, 6.0
      %v1676 = vmin.f32 %v1644, 6.0
      %v1677 = vmin.f32 %v1645, 6.0
      %v1678 = vmin.f32 %v1646, 6.0
      %v1679 = vmin.f32 %v1647, 6.0
      %v1680 = vmin.f32 %v1648, 6.0
      %v1681 = vmin.f32 %v1649, 6.0
      %v1682 = vmin.f32 %v1650, 6.0
      %v1683 = vmin.f32 %v1651, 6.0
      %v1684 = vmin.f32 %v1652, 6.0
      %v1685 = vmin.f32 %v1653, 6.0
      %v1686 = vmin.f32 %v1654, 6.0
      %v1687 = vmin.f32 %v1655, 6.0
      %v1688 = vmin.f32 %v1656, 6.0
      %v1689 = vmin.f32 %v1657, 6.0
      %v1690 = vmin.f32 %v1658, 6.0
      %v1691 = vmin.f32 %v1659, 6.0
      %v1692 = vmin.f32 %v1660, 6.0
      %v1693 = vmin.f32 %v1661, 6.0
      %v1694 = vmin.f32 %v1662, 6.0
      %v1695 = vmin.f32 %v1663, 6.0
      %v1696 = vmin.f32 %v1664, 6.0
      %v1697 = vmin.f32 %v1665, 6.0
      %v1698 = vmin.f32 %v1666, 6.0
      %v1699 = vmin.f32 %v1667, 6.0
      %v1700 = vld [vmem:[%s5] sm:$0xff]
      %v1701 = vld [vmem:[%s5 + $0x8] sm:$0xff]
      %v1702 = vld [vmem:[%s5 + $0x10] sm:$0xff]
      %v1703 = vld [vmem:[%s6] sm:$0x1]
      %v1705 = vlaneseq
      %v1706 = vshrl.u32 %v1705, 7
      %v1707 = vsub.s32 0, %v1706
      %v1708 = vrot.slane %v1703, %v1707
      %v1711 = vsel %vm828, %v1668, 0
      %v1714 = vsel %vm828, %v1669, 0
      %v1717 = vsel %vm828, %v1670, 0
      %v1720 = vsel %vm828, %v1671, 0
      %v1723 = vsel %vm828, %v1672, 0
      %v1726 = vsel %vm828, %v1673, 0
      %v1729 = vsel %vm828, %v1674, 0
      %v1732 = vsel %vm828, %v1675, 0
      %v1735 = vsel %vm828, %v1676, 0
      %v1738 = vsel %vm828, %v1677, 0
      %v1741 = vsel %vm828, %v1678, 0
      %v1744 = vsel %vm828, %v1679, 0
      %v1747 = vsel %vm828, %v1680, 0
      %v1750 = vsel %vm828, %v1681, 0
      %v1753 = vsel %vm828, %v1682, 0
      %v1756 = vsel %vm828, %v1683, 0
      %v1759 = vsel %vm828, %v1684, 0
      %v1762 = vsel %vm828, %v1685, 0
      %v1765 = vsel %vm828, %v1686, 0
      %v1768 = vsel %vm828, %v1687, 0
      %v1771 = vsel %vm828, %v1688, 0
      %v1774 = vsel %vm828, %v1689, 0
      %v1777 = vsel %vm828, %v1690, 0
      %v1780 = vsel %vm828, %v1691, 0
      %v1783 = vsel %vm828, %v1692, 0
      %v1786 = vsel %vm828, %v1693, 0
      %v1789 = vsel %vm828, %v1694, 0
      %v1792 = vsel %vm828, %v1695, 0
      %v1795 = vsel %vm828, %v1696, 0
      %v1798 = vsel %vm828, %v1697, 0
      %v1801 = vsel %vm828, %v1698, 0
      %v1804 = vsel %vm828, %v1699, 0
      %1806 = vmatprep.subr.mxu0 0.0
      %1807 = vmatpush1.msra.mxu0 %v1700
      %1808 = vmatprep.subr.mxu0 0.0
      %1809 = vmatpush1.msra.mxu0 %v1701
      %1810 = vmatprep.subr.mxu0 0.0
      %1811 = vmatpush1.msra.mxu0 %v1702
      %1812 = vmatprep.subr.mxu0 0.0
      %1813 = vmatpush1.msra.mxu0 0.0
      %1814 = vmatprep.subr.mxu0 0.0
      %1815 = vmatpush1.msra.mxu0 0.0
      %1816 = vmatprep.subr.mxu0 0.0
      %1817 = vmatpush1.msra.mxu0 0.0
      %1818 = vmatprep.subr.mxu0 0.0
      %1819 = vmatpush1.msra.mxu0 0.0
      %1820 = vmatprep.subr.mxu0 0.0
      %1821 = vmatpush1.msra.mxu0 0.0
      %1822 = vmatprep.subr.mxu0 0.0
      %1823 = vmatpush1.msra.mxu0 0.0
      %1824 = vmatprep.subr.mxu0 0.0
      %1825 = vmatpush1.msra.mxu0 0.0
      %1826 = vmatprep.subr.mxu0 0.0
      %1827 = vmatpush1.msra.mxu0 0.0
      %1828 = vmatprep.subr.mxu0 0.0
      %1829 = vmatpush1.msra.mxu0 0.0
      %1830 = vmatprep.subr.mxu0 0.0
      %1831 = vmatpush1.msra.mxu0 0.0
      %1832 = vmatprep.subr.mxu0 0.0
      %1833 = vmatpush1.msra.mxu0 0.0
      %1834 = vmatprep.subr.mxu0 0.0
      %1835 = vmatpush1.msra.mxu0 0.0
      %1836 = vmatprep.subr.mxu0 0.0
      %1837 = vmatpush1.msra.mxu0 0.0
      %1838 = vmatprep.subr.mxu0 0.0
      %1839 = vmatpush1.msra.mxu0 0.0
      %1840 = vmatprep.subr.mxu0 0.0
      %1841 = vmatpush1.msra.mxu0 0.0
      %1842 = vmatprep.subr.mxu0 0.0
      %1843 = vmatpush1.msra.mxu0 0.0
      %1844 = vmatprep.subr.mxu0 0.0
      %1845 = vmatpush1.msra.mxu0 0.0
      %1846 = vmatprep.subr.mxu0 0.0
      %1847 = vmatpush1.msra.mxu0 0.0
      %1848 = vmatprep.subr.mxu0 0.0
      %1849 = vmatpush1.msra.mxu0 0.0
      %1850 = vmatprep.subr.mxu0 0.0
      %1851 = vmatpush1.msra.mxu0 0.0
      %1852 = vmatprep.subr.mxu0 0.0
      %1853 = vmatpush1.msra.mxu0 0.0
      %1854 = vmatprep.subr.mxu0 0.0
      %1855 = vmatpush1.msra.mxu0 0.0
      %1856 = vmatprep.subr.mxu0 0.0
      %1857 = vmatpush1.msra.mxu0 0.0
      %1858 = vmatprep.subr.mxu0 0.0
      %1859 = vmatpush1.msra.mxu0 0.0
      %1860 = vmatprep.subr.mxu0 0.0
      %1861 = vmatpush1.msra.mxu0 0.0
      %1862 = vmatprep.subr.mxu0 0.0
      %1863 = vmatpush1.msra.mxu0 0.0
      %1864 = vmatprep.subr.mxu0 0.0
      %1865 = vmatpush1.msra.mxu0 0.0
      %1866 = vmatprep.subr.mxu0 0.0
      %1867 = vmatpush1.msra.mxu0 0.0
      %1868 = vmatprep.subr.mxu0 0.0
      %1869 = vmatpush1.msra.mxu0 0.0
      %1870 = vmatprep.mubr.f32.mxu0 0.0
      %1871 = vmatmul.mubr.f32.gmra.mrb[0].mxu0 %v1711
      %v1872 = vpop.f32.mrb[0].mxu0
      %v1873 = vadd.f32 %v1708, %v1872
      %v1874 = vpop.f32.mrb[0].mxu0
      %1875 = vmatprep.mubr.f32.mxu0 0.0
      %1876 = vmatmul.mubr.f32.gmra.mrb[0].mxu0 %v1714
      %v1877 = vpop.f32.mrb[0].mxu0
      %v1878 = vadd.f32 %v1708, %v1877
      %v1879 = vpop.f32.mrb[0].mxu0
      %1880 = vmatprep.mubr.f32.mxu0 0.0
      %1881 = vmatmul.mubr.f32.gmra.mrb[0].mxu0 %v1717
      %v1882 = vpop.f32.mrb[0].mxu0
      %v1883 = vadd.f32 %v1708, %v1882
      %v1884 = vpop.f32.mrb[0].mxu0
      %1885 = vmatprep.mubr.f32.mxu0 0.0
      %1886 = vmatmul.mubr.f32.gmra.mrb[0].mxu0 %v1720
      %v1887 = vpop.f32.mrb[0].mxu0
      %v1888 = vadd.f32 %v1708, %v1887
      %v1889 = vpop.f32.mrb[0].mxu0
      %1890 = vmatprep.mubr.f32.mxu0 0.0
      %1891 = vmatmul.mubr.f32.gmra.mrb[0].mxu0 %v1723
      %v1892 = vpop.f32.mrb[0].mxu0
      %v1893 = vadd.f32 %v1708, %v1892
      %v1894 = vpop.f32.mrb[0].mxu0
      %1895 = vmatprep.mubr.f32.mxu0 0.0
      %1896 = vmatmul.mubr.f32.gmra.mrb[0].mxu0 %v1726
      %v1897 = vpop.f32.mrb[0].mxu0
      %v1898 = vadd.f32 %v1708, %v1897
      %v1899 = vpop.f32.mrb[0].mxu0
      %1900 = vmatprep.mubr.f32.mxu0 0.0
      %1901 = vmatmul.mubr.f32.gmra.mrb[0].mxu0 %v1729
      %v1902 = vpop.f32.mrb[0].mxu0
      %v1903 = vadd.f32 %v1708, %v1902
      %v1904 = vpop.f32.mrb[0].mxu0
      %1905 = vmatprep.mubr.f32.mxu0 0.0
      %1906 = vmatmul.mubr.f32.gmra.mrb[0].mxu0 %v1732
      %v1907 = vpop.f32.mrb[0].mxu0
      %v1908 = vadd.f32 %v1708, %v1907
      %v1909 = vpop.f32.mrb[0].mxu0
      %1910 = vmatprep.mubr.f32.mxu0 0.0
      %1911 = vmatmul.mubr.f32.gmra.mrb[0].mxu0 %v1735
      %v1912 = vpop.f32.mrb[0].mxu0
      %v1913 = vadd.f32 %v1708, %v1912
      %v1914 = vpop.f32.mrb[0].mxu0
      %1915 = vmatprep.mubr.f32.mxu0 0.0
      %1916 = vmatmul.mubr.f32.gmra.mrb[0].mxu0 %v1738
      %v1917 = vpop.f32.mrb[0].mxu0
      %v1918 = vadd.f32 %v1708, %v1917
      %v1919 = vpop.f32.mrb[0].mxu0
      %1920 = vmatprep.mubr.f32.mxu0 0.0
      %1921 = vmatmul.mubr.f32.gmra.mrb[0].mxu0 %v1741
      %v1922 = vpop.f32.mrb[0].mxu0
      %v1923 = vadd.f32 %v1708, %v1922
      %v1924 = vpop.f32.mrb[0].mxu0
      %1925 = vmatprep.mubr.f32.mxu0 0.0
      %1926 = vmatmul.mubr.f32.gmra.mrb[0].mxu0 %v1744
      %v1927 = vpop.f32.mrb[0].mxu0
      %v1928 = vadd.f32 %v1708, %v1927
      %v1929 = vpop.f32.mrb[0].mxu0
      %1930 = vmatprep.mubr.f32.mxu0 0.0
      %1931 = vmatmul.mubr.f32.gmra.mrb[0].mxu0 %v1747
      %v1932 = vpop.f32.mrb[0].mxu0
      %v1933 = vadd.f32 %v1708, %v1932
      %v1934 = vpop.f32.mrb[0].mxu0
      %1935 = vmatprep.mubr.f32.mxu0 0.0
      %1936 = vmatmul.mubr.f32.gmra.mrb[0].mxu0 %v1750
      %v1937 = vpop.f32.mrb[0].mxu0
      %v1938 = vadd.f32 %v1708, %v1937
      %v1939 = vpop.f32.mrb[0].mxu0
      %1940 = vmatprep.mubr.f32.mxu0 0.0
      %1941 = vmatmul.mubr.f32.gmra.mrb[0].mxu0 %v1753
      %v1942 = vpop.f32.mrb[0].mxu0
      %v1943 = vadd.f32 %v1708, %v1942
      %v1944 = vpop.f32.mrb[0].mxu0
      %1945 = vmatprep.mubr.f32.mxu0 0.0
      %1946 = vmatmul.mubr.f32.gmra.mrb[0].mxu0 %v1756
      %v1947 = vpop.f32.mrb[0].mxu0
      %v1948 = vadd.f32 %v1708, %v1947
      %v1949 = vpop.f32.mrb[0].mxu0
      %1950 = vmatprep.mubr.f32.mxu0 0.0
      %1951 = vmatmul.mubr.f32.gmra.mrb[0].mxu0 %v1759
      %v1952 = vpop.f32.mrb[0].mxu0
      %v1953 = vadd.f32 %v1708, %v1952
      %v1954 = vpop.f32.mrb[0].mxu0
      %1955 = vmatprep.mubr.f32.mxu0 0.0
      %1956 = vmatmul.mubr.f32.gmra.mrb[0].mxu0 %v1762
      %v1957 = vpop.f32.mrb[0].mxu0
      %v1958 = vadd.f32 %v1708, %v1957
      %v1959 = vpop.f32.mrb[0].mxu0
      %1960 = vmatprep.mubr.f32.mxu0 0.0
      %1961 = vmatmul.mubr.f32.gmra.mrb[0].mxu0 %v1765
      %v1962 = vpop.f32.mrb[0].mxu0
      %v1963 = vadd.f32 %v1708, %v1962
      %v1964 = vpop.f32.mrb[0].mxu0
      %1965 = vmatprep.mubr.f32.mxu0 0.0
      %1966 = vmatmul.mubr.f32.gmra.mrb[0].mxu0 %v1768
      %v1967 = vpop.f32.mrb[0].mxu0
      %v1968 = vadd.f32 %v1708, %v1967
      %v1969 = vpop.f32.mrb[0].mxu0
      %1970 = vmatprep.mubr.f32.mxu0 0.0
      %1971 = vmatmul.mubr.f32.gmra.mrb[0].mxu0 %v1771
      %v1972 = vpop.f32.mrb[0].mxu0
      %v1973 = vadd.f32 %v1708, %v1972
      %v1974 = vpop.f32.mrb[0].mxu0
      %1975 = vmatprep.mubr.f32.mxu0 0.0
      %1976 = vmatmul.mubr.f32.gmra.mrb[0].mxu0 %v1774
      %v1977 = vpop.f32.mrb[0].mxu0
      %v1978 = vadd.f32 %v1708, %v1977
      %v1979 = vpop.f32.mrb[0].mxu0
      %1980 = vmatprep.mubr.f32.mxu0 0.0
      %1981 = vmatmul.mubr.f32.gmra.mrb[0].mxu0 %v1777
      %v1982 = vpop.f32.mrb[0].mxu0
      %v1983 = vadd.f32 %v1708, %v1982
      %v1984 = vpop.f32.mrb[0].mxu0
      %1985 = vmatprep.mubr.f32.mxu0 0.0
      %1986 = vmatmul.mubr.f32.gmra.mrb[0].mxu0 %v1780
      %v1987 = vpop.f32.mrb[0].mxu0
      %v1988 = vadd.f32 %v1708, %v1987
      %v1989 = vpop.f32.mrb[0].mxu0
      %1990 = vmatprep.mubr.f32.mxu0 0.0
      %1991 = vmatmul.mubr.f32.gmra.mrb[0].mxu0 %v1783
      %v1992 = vpop.f32.mrb[0].mxu0
      %v1993 = vadd.f32 %v1708, %v1992
      %v1994 = vpop.f32.mrb[0].mxu0
      %1995 = vmatprep.mubr.f32.mxu0 0.0
      %1996 = vmatmul.mubr.f32.gmra.mrb[0].mxu0 %v1786
      %v1997 = vpop.f32.mrb[0].mxu0
      %v1998 = vadd.f32 %v1708, %v1997
      %v1999 = vpop.f32.mrb[0].mxu0
      %2000 = vmatprep.mubr.f32.mxu0 0.0
      %2001 = vmatmul.mubr.f32.gmra.mrb[0].mxu0 %v1789
      %v2002 = vpop.f32.mrb[0].mxu0
      %v2003 = vadd.f32 %v1708, %v2002
      %v2004 = vpop.f32.mrb[0].mxu0
      %2005 = vmatprep.mubr.f32.mxu0 0.0
      %2006 = vmatmul.mubr.f32.gmra.mrb[0].mxu0 %v1792
      %v2007 = vpop.f32.mrb[0].mxu0
      %v2008 = vadd.f32 %v1708, %v2007
      %v2009 = vpop.f32.mrb[0].mxu0
      %2010 = vmatprep.mubr.f32.mxu0 0.0
      %2011 = vmatmul.mubr.f32.gmra.mrb[0].mxu0 %v1795
      %v2012 = vpop.f32.mrb[0].mxu0
      %v2013 = vadd.f32 %v1708, %v2012
      %v2014 = vpop.f32.mrb[0].mxu0
      %2015 = vmatprep.mubr.f32.mxu0 0.0
      %2016 = vmatmul.mubr.f32.gmra.mrb[0].mxu0 %v1798
      %v2017 = vpop.f32.mrb[0].mxu0
      %v2018 = vadd.f32 %v1708, %v2017
      %v2019 = vpop.f32.mrb[0].mxu0
      %2020 = vmatprep.mubr.f32.mxu0 0.0
      %2021 = vmatmul.mubr.f32.gmra.mrb[0].mxu0 %v1801
      %v2022 = vpop.f32.mrb[0].mxu0
      %v2023 = vadd.f32 %v1708, %v2022
      %v2024 = vpop.f32.mrb[0].mxu0
      %2025 = vmatprep.mubr.f32.mxu0 0.0
      %2026 = vmatmul.mubr.f32.gmra.mrb[0].mxu0 %v1804
      %v2027 = vpop.f32.mrb[0].mxu0
      %v2028 = vadd.f32 %v1708, %v2027
      %v2029 = vpop.f32.mrb[0].mxu0
      %2030 = vdwg.mxu0
      %v2031 = vadd.f32 %v1873, %v314
      %v2032 = vadd.f32 %v1878, %v315
      %v2033 = vadd.f32 %v1883, %v316
      %v2034 = vadd.f32 %v1888, %v317
      %v2035 = vadd.f32 %v1893, %v318
      %v2036 = vadd.f32 %v1898, %v319
      %v2037 = vadd.f32 %v1903, %v320
      %v2038 = vadd.f32 %v1908, %v321
      %v2039 = vadd.f32 %v1913, %v322
      %v2040 = vadd.f32 %v1918, %v323
      %v2041 = vadd.f32 %v1923, %v324
      %v2042 = vadd.f32 %v1928, %v325
      %v2043 = vadd.f32 %v1933, %v326
      %v2044 = vadd.f32 %v1938, %v327
      %v2045 = vadd.f32 %v1943, %v328
      %v2046 = vadd.f32 %v1948, %v329
      %v2047 = vadd.f32 %v1953, %v330
      %v2048 = vadd.f32 %v1958, %v331
      %v2049 = vadd.f32 %v1963, %v332
      %v2050 = vadd.f32 %v1968, %v333
      %v2051 = vadd.f32 %v1973, %v334
      %v2052 = vadd.f32 %v1978, %v335
      %v2053 = vadd.f32 %v1983, %v336
      %v2054 = vadd.f32 %v1988, %v337
      %v2055 = vadd.f32 %v1993, %v338
      %v2056 = vadd.f32 %v1998, %v339
      %v2057 = vadd.f32 %v2003, %v340
      %v2058 = vadd.f32 %v2008, %v341
      %v2059 = vadd.f32 %v2013, %v342
      %v2060 = vadd.f32 %v2018, %v343
      %v2061 = vadd.f32 %v2023, %v344
      %v2062 = vadd.f32 %v2028, %v345
      %2063 = vst.msk [vmem:[%s302] sm:$0xff] %vm361, %v2031
      %2064 = vst.msk [vmem:[%s302 + $0x8] sm:$0xff] %vm361, %v2032
      %2065 = vst.msk [vmem:[%s302 + $0x10] sm:$0xff] %vm361, %v2033
      %2066 = vst.msk [vmem:[%s302 + $0x18] sm:$0xff] %vm361, %v2034
      %2067 = vst.msk [vmem:[%s302 + $0x20] sm:$0xff] %vm361, %v2035
      %2068 = vst.msk [vmem:[%s302 + $0x28] sm:$0xff] %vm361, %v2036
      %2069 = vst.msk [vmem:[%s302 + $0x30] sm:$0xff] %vm361, %v2037
      %2070 = vst.msk [vmem:[%s302 + $0x38] sm:$0xff] %vm361, %v2038
      %2071 = vst.msk [vmem:[%s302 + $0x40] sm:$0xff] %vm361, %v2039
      %2072 = vst.msk [vmem:[%s302 + $0x48] sm:$0xff] %vm361, %v2040
      %2073 = vst.msk [vmem:[%s302 + $0x50] sm:$0xff] %vm361, %v2041
      %2074 = vst.msk [vmem:[%s302 + $0x58] sm:$0xff] %vm361, %v2042
      %2075 = vst.msk [vmem:[%s302 + $0x60] sm:$0xff] %vm361, %v2043
      %2076 = vst.msk [vmem:[%s302 + $0x68] sm:$0xff] %vm361, %v2044
      %2077 = vst.msk [vmem:[%s302 + $0x70] sm:$0xff] %vm361, %v2045
      %2078 = vst.msk [vmem:[%s302 + $0x78] sm:$0xff] %vm361, %v2046
      %2079 = vst.msk [vmem:[%s302 + $0x80] sm:$0xff] %vm361, %v2047
      %2080 = vst.msk [vmem:[%s302 + $0x88] sm:$0xff] %vm361, %v2048
      %2081 = vst.msk [vmem:[%s302 + $0x90] sm:$0xff] %vm361, %v2049
      %2082 = vst.msk [vmem:[%s302 + $0x98] sm:$0xff] %vm361, %v2050
      %2083 = vst.msk [vmem:[%s302 + $0xa0] sm:$0xff] %vm361, %v2051
      %2084 = vst.msk [vmem:[%s302 + $0xa8] sm:$0xff] %vm361, %v2052
      %2085 = vst.msk [vmem:[%s302 + $0xb0] sm:$0xff] %vm361, %v2053
      %2086 = vst.msk [vmem:[%s302 + $0xb8] sm:$0xff] %vm361, %v2054
      %2087 = vst.msk [vmem:[%s302 + $0xc0] sm:$0xff] %vm361, %v2055
      %2088 = vst.msk [vmem:[%s302 + $0xc8] sm:$0xff] %vm361, %v2056
      %2089 = vst.msk [vmem:[%s302 + $0xd0] sm:$0xff] %vm361, %v2057
      %2090 = vst.msk [vmem:[%s302 + $0xd8] sm:$0xff] %vm361, %v2058
      %2091 = vst.msk [vmem:[%s302 + $0xe0] sm:$0xff] %vm361, %v2059
      %2092 = vst.msk [vmem:[%s302 + $0xe8] sm:$0xff] %vm361, %v2060
      %2093 = vst.msk [vmem:[%s302 + $0xf0] sm:$0xff] %vm361, %v2061
      %2094 = vst.msk [vmem:[%s302 + $0xf8] sm:$0xff] %vm361, %v2062
      %s2095 = smul.u32 16, %s23
      %p2096 = scmp.lt.s32.totalorder %s22, 1
      %s2097 = scalar_select %p2096, %s22, 1
      %p2098 = scmp.lt.s32.totalorder %s2095, 15
      %s2099 = scalar_select %p2098, %s2095, 15
      %s2100 = smul.addr %s2099, 2
      %s2101 = smul.addr %s2097, 32
      %s2102 = sadd.s32 %s2100, %s2101
      %s2103 = smul.addr %s2102, 8
      %s2104 = scalar_lea.vmem %s7, %s2103
      // Predicated region
      $region53: #{tpu_custom_call.1} parent=47 // pred_check
        %p2105 = pneg %p202
      $region54: #{tpu_custom_call.1} parent=47 // pred_check_branch
        %2107 = sbr.rel (%p2105) target = $region56
      $region55: #{tpu_custom_call.1} parent=47 // pred_region
        %s2108 = smul.u32 16, %s23
      $region56: #{tpu_custom_call.1} parent=47 // pred_fallthru
        _
    $region48: #{tpu_custom_call.1} parent=5 // pred_fallthru
      _
    %p2109 = scmp.le.s32.totalorder 2, %s13
    // Predicated region
    $region57: #{tpu_custom_call.1} parent=5 // pred_check
      %p2110 = pneg %p2109
    $region58: #{tpu_custom_call.1} parent=5 // pred_check_branch
      %2112 = sbr.rel (%p2110) target = $region60
    $region59: #{tpu_custom_call.1} parent=5 // pred_region
      %s2113 = ssub.s32 %s13, 2
      // Predicated region
      $region61: #{tpu_custom_call.1} parent=59 // pred_check
        %p2114 = pneg %p208
      $region62: #{tpu_custom_call.1} parent=59 // pred_check_branch
        %2116 = sbr.rel (%p2114) target = $region64
      $region63: #{tpu_custom_call.1} parent=59 // pred_region
        %s2117 = smul.u32 16, %s25
        %p2118 = scmp.lt.s32.totalorder %s24, 1
        %s2119 = scalar_select %p2118, %s24, 1
        %p2120 = scmp.lt.s32.totalorder %s2117, 15
        %s2121 = scalar_select %p2120, %s2117, 15
        %s2122 = smul.addr %s2121, 2
        %s2123 = smul.addr %s2119, 32
        %s2124 = sadd.s32 %s2122, %s2123
        %s2125 = smul.addr %s2124, 8
        %s2126 = scalar_lea.vmem %s7, %s2125
      $region64: #{tpu_custom_call.1} parent=59 // pred_fallthru
        _
    $region60: #{tpu_custom_call.1} parent=5 // pred_fallthru
      _
  $region6: #{tpu_custom_call.1} parent=0 // loop_footer
    %s17 = sadd.s32 1, %s13
  $region7: #{tpu_custom_call.1} parent=0 // loop_footer_branch
    %12 = sbr.rel target = $region3
  $region8: #{tpu_custom_call.1} parent=0 // loop_exit
    _

</llo_original>
